<compile_context>
chip_gen: v7x
topology: tpu7x:2x2x1
jax: 0.10.0
libtpu: 0.0.40
codegen_flags: <defaults>
</compile_context>

<pallas_src>
import functools

import jax
import jax.numpy as jnp
import numpy as np
from jax.experimental import pallas as pl
from jax.experimental.pallas import tpu as pltpu


def _round_up(x, m):
    return -(-x // m) * m


# ----------------------------------------------------------------------------
# Fused Bottleneck kernel: one (batch, row-tile) per grid step
# ----------------------------------------------------------------------------
def _bottleneck_kernel(*refs, stride, wq, log2_wq, h, w, tr, has_down):
    """conv1+BN+ReLU, conv2(3x3)+BN+ReLU, conv3+BN, residual(+downsample), ReLU."""
    if has_down:
        (xq_ref, w1_ref, b1_ref, w2_ref, b2_ref, w3_ref, b3_ref,
         wd_ref, bd_ref, o_ref, h1_ref) = refs
    else:
        (xq_ref, w1_ref, b1_ref, w2_ref, b2_ref, w3_ref, b3_ref,
         o_ref, h1_ref) = refs
        wd_ref = bd_ref = None

    s = stride
    lt_out = o_ref.shape[1]          # tr * wq output pixels this step
    lt_h1 = h1_ref.shape[1]          # tr * wq + halo pixels of h1 this step

    r = pl.program_id(1)
    i0 = r * tr                                   # first parity-grid row of the tile
    base = pl.multiple_of(r * (tr * wq), wq)      # flat offset into every parity plane

    # Parity-grid (row, col) of every pixel in this step's h1 slab.
    # wq is a power of two -> shift/and instead of vector div/mod.
    fidx = jax.lax.broadcasted_iota(jnp.int32, (lt_h1, 1), 0)
    row = jnp.right_shift(fidx, log2_wq) + i0
    col = jnp.bitwise_and(fidx, wq - 1)

    # ---- conv1 (1x1) + folded BN bias + ReLU, staged into VMEM scratch ------
    # The in-kernel mask re-zeroes conv2's zero-padding ring (conv1(0)+bias
    # followed by ReLU is not 0), plus the width-pad / halo pixels.
    w1 = w1_ref[...]
    b1 = b1_ref[...]
    for t in range(s * s):
        py, px = t // s, t % s
        xf = xq_ref[0, t, pl.ds(base, lt_h1), :]                  # (lt_h1, cin) bf16
        v = jnp.dot(xf, w1, preferred_element_type=jnp.float32)
        v = jnp.maximum(v + b1, 0.0)
        yy = s * row + py
        xx = s * col + px
        valid = (yy >= 1) & (yy <= h) & (xx >= 1) & (xx <= w)
        h1_ref[t, :, :] = jnp.where(valid, v, 0.0).astype(jnp.bfloat16)

    # ---- conv2 (3x3, stride, pad=1) + folded BN bias + ReLU ------------------
    # 9 shifted MXU matmuls; every window is a static slice of the h1 scratch
    # ref (the row component of the shift is 8-aligned because wq % 8 == 0).
    acc = None
    for ky in range(3):
        py, dy = ky % s, ky // s
        for kx in range(3):
            px, dx = kx % s, kx // s
            shift = dy * wq + dx
            win = h1_ref[py * s + px, shift:shift + lt_out, :]
            d = jnp.dot(win, w2_ref[ky * 3 + kx],
                        preferred_element_type=jnp.float32)
            acc = d if acc is None else acc + d
    h2 = jnp.maximum(acc + b2_ref[...], 0.0).astype(jnp.bfloat16)

    # ---- residual (downsample 1x1 stride-s conv + BN, or identity) -----------
    # Tap (1,1) of the padded input == parity plane (1%s,1%s), flat shift
    # (1//s)*(wq+1); read straight from the input ref.
    rplane = (1 % s) * s + (1 % s)
    rshift = (1 // s) * (wq + 1)
    xr = xq_ref[0, rplane, pl.ds(base + rshift, lt_out), :]       # (lt_out, cin)
    if has_down:
        res = jnp.dot(xr, wd_ref[...], preferred_element_type=jnp.float32) + bd_ref[...]
    else:
        res = xr.astype(jnp.float32)          # identity shortcut (cin == 4*planes)

    # ---- conv3 (1x1) + folded BN bias + residual add + final ReLU ------------
    out = jnp.dot(h2, w3_ref[...], preferred_element_type=jnp.float32)
    o_ref[0] = jnp.maximum(out + b3_ref[...] + res, 0.0).astype(o_ref.dtype)


# ----------------------------------------------------------------------------
# Wrapper: layout prep (pad + parity split) and the single pallas_call
# ----------------------------------------------------------------------------
def _pick_row_tile(hq, wq, max_tile_pixels):
    best = 1
    for d in range(1, hq + 1):
        if hq % d == 0 and d * wq <= max_tile_pixels:
            best = d
    return best


def bottleneck_forward(x_nchw, params, stride, max_tile_pixels=1024):
    """Forward pass of the Bottleneck block.  Input/output are NCHW like PyTorch."""
    s = int(stride)
    x = jnp.transpose(x_nchw, (0, 2, 3, 1))                  # NCHW -> NHWC
    n, h, w, cin = x.shape
    assert (h + 2) % s == 0 and (w + 2) % s == 0

    p = params["w1"].shape[1]
    c4 = params["w3"].shape[1]
    hq, wq_raw = (h + 2) // s, (w + 2) // s                  # parity-plane grid
    ho, wo = (h - 1) // s + 1, (w - 1) // s + 1              # conv2 output size
    wq = max(8, 1 << (wq_raw - 1).bit_length())              # plane width: pow2 >= 8
    log2_wq = wq.bit_length() - 1
    dmax = 2 // s                                            # max tap row/col offset
    pad_extra = _round_up(dmax * wq + dmax, 8)               # halo for shifted slices
    L = hq * wq
    Lp = L + pad_extra

    tr = _pick_row_tile(hq, wq, max_tile_pixels)             # rows per grid step
    n_tiles = hq // tr
    lt_out = tr * wq
    lt_h1 = lt_out + pad_extra

    # Zero-pad (conv2 padding=1 + width pad to s*wq in one pass), split into
    # stride-parity planes and flatten row-major with a zero halo tail:
    #   xq[n, py*s+px, i*wq+j, c] = xpad[n, s*i+py, s*j+px, c]
    xpad = jnp.pad(x, ((0, 0), (1, 1), (1, 1 + s * (wq - wq_raw)), (0, 0)))
    if s == 1:                                               # parity split is identity
        xq = xpad.reshape(n, 1, hq * wq, cin)
    else:
        xq = xpad.reshape(n, hq, s, wq, s, cin).transpose(0, 2, 4, 1, 3, 5)
        xq = xq.reshape(n, s * s, hq * wq, cin)
    xq = jnp.pad(xq, ((0, 0), (0, 0), (0, pad_extra), (0, 0))).astype(jnp.bfloat16)

    has_down = params["wd"] is not None
    if not has_down:
        assert s == 1 and cin == c4, "identity shortcut requires matching shapes"

    args = [xq, params["w1"], params["b1"], params["w2"], params["b2"],
            params["w3"], params["b3"]]
    in_specs = [
        pl.BlockSpec((1, s * s, Lp, cin), lambda b, r: (b, 0, 0, 0)),
        pl.BlockSpec((cin, p), lambda b, r: (0, 0)),
        pl.BlockSpec((1, p), lambda b, r: (0, 0)),
        pl.BlockSpec((9, p, p), lambda b, r: (0, 0, 0)),
        pl.BlockSpec((1, p), lambda b, r: (0, 0)),
        pl.BlockSpec((p, c4), lambda b, r: (0, 0)),
        pl.BlockSpec((1, c4), lambda b, r: (0, 0)),
    ]
    if has_down:
        args += [params["wd"], params["bd"]]
        in_specs += [pl.BlockSpec((cin, c4), lambda b, r: (0, 0)),
                     pl.BlockSpec((1, c4), lambda b, r: (0, 0))]

    kernel = functools.partial(
        _bottleneck_kernel, stride=s, wq=wq, log2_wq=log2_wq,
        h=h, w=w, tr=tr, has_down=has_down)

    out = pl.pallas_call(
        kernel,
        out_shape=jax.ShapeDtypeStruct((n, L, c4), jnp.bfloat16),
        grid=(n, n_tiles),
        in_specs=in_specs,
        out_specs=pl.BlockSpec((1, lt_out, c4), lambda b, r: (b, r, 0)),
        scratch_shapes=[pltpu.VMEM((s * s, lt_h1, p), jnp.bfloat16)],
        compiler_params=pltpu.CompilerParams(
            dimension_semantics=("parallel", "parallel"),
            vmem_limit_bytes=48 * 1024 * 1024),
    )(*args)

    out = out.reshape(n, hq, wq, c4)[:, :ho, :wo, :]         # crop the padded grid
    return jnp.transpose(out, (0, 3, 1, 2)).astype(jnp.float32)   # NHWC -> NCHW


# ----------------------------------------------------------------------------
# Deterministic parameter construction (PyTorch layout) + BN folding
# ----------------------------------------------------------------------------
def make_params(key, inplanes, planes, stride):
    expansion = 4
    ks = jax.random.split(key, 8)
    f32 = jnp.float32

    def conv_w(k, cout, cin, kh, kw):
        return (0.05 * jax.random.normal(k, (cout, cin, kh, kw))).astype(f32)

    def bn(k, c):
        k1, k2, k3, k4 = jax.random.split(k, 4)
        gamma = jax.random.uniform(k1, (c,), minval=0.5, maxval=1.5).astype(f32)
        beta = (0.1 * jax.random.normal(k2, (c,))).astype(f32)
        mean = (0.1 * jax.random.normal(k3, (c,))).astype(f32)
        var = jax.random.uniform(k4, (c,), minval=0.5, maxval=1.5).astype(f32)
        return gamma, beta, mean, var

    raw = {
        "w1": conv_w(ks[0], planes, inplanes, 1, 1),
        "bn1": bn(ks[1], planes),
        "w2": conv_w(ks[2], planes, planes, 3, 3),
        "bn2": bn(ks[3], planes),
        "w3": conv_w(ks[4], planes * expansion, planes, 1, 1),
        "bn3": bn(ks[5], planes * expansion),
        "wd": None,
        "bnd": None,
    }
    if stride != 1 or inplanes != planes * expansion:
        raw["wd"] = conv_w(ks[6], planes * expansion, inplanes, 1, 1)
        raw["bnd"] = bn(ks[7], planes * expansion)
    return raw


def fold_params(raw):
    """Fold inference-mode BN into the conv weights (scale) + a per-channel bias."""
    eps = 1e-5

    def fold(bn_tuple):
        gamma, beta, mean, var = bn_tuple
        scale = gamma / jnp.sqrt(var + eps)
        bias = beta - mean * scale
        return scale, bias

    p = {}
    s1, b1 = fold(raw["bn1"])
    p["w1"] = (jnp.transpose(raw["w1"][:, :, 0, 0], (1, 0)) * s1[None, :]).astype(jnp.bfloat16)
    p["b1"] = b1.reshape(1, -1).astype(jnp.float32)

    s2, b2 = fold(raw["bn2"])
    w2 = jnp.transpose(raw["w2"], (2, 3, 1, 0))              # (3,3,Cin,Cout), tap = ky*3+kx
    w2 = w2.reshape(9, w2.shape[2], w2.shape[3])
    p["w2"] = (w2 * s2[None, None, :]).astype(jnp.bfloat16)
    p["b2"] = b2.reshape(1, -1).astype(jnp.float32)

    s3, b3 = fold(raw["bn3"])
    p["w3"] = (jnp.transpose(raw["w3"][:, :, 0, 0], (1, 0)) * s3[None, :]).astype(jnp.bfloat16)
    p["b3"] = b3.reshape(1, -1).astype(jnp.float32)

    if raw["wd"] is not None:
        sd, bd = fold(raw["bnd"])
        p["wd"] = (jnp.transpose(raw["wd"][:, :, 0, 0], (1, 0)) * sd[None, :]).astype(jnp.bfloat16)
        p["bd"] = bd.reshape(1, -1).astype(jnp.float32)
    else:
        p["wd"] = None
        p["bd"] = None
    return p


# ----------------------------------------------------------------------------
# Pure-JAX f32 reference (inference-mode BN) for validation
# ----------------------------------------------------------------------------
def ref_forward(x_nchw, raw, stride):
    eps = 1e-5

    def conv(x, w, s=1, p=0):
        return jax.lax.conv_general_dilated(
            x, w, (s, s), [(p, p), (p, p)],
            dimension_numbers=("NCHW", "OIHW", "NCHW"))

    def bn(x, t):
        g, b, m, v = t
        return (x - m[None, :, None, None]) / jnp.sqrt(v[None, :, None, None] + eps) \
            * g[None, :, None, None] + b[None, :, None, None]

    out = jax.nn.relu(bn(conv(x_nchw, raw["w1"]), raw["bn1"]))
    out = jax.nn.relu(bn(conv(out, raw["w2"], s=stride, p=1), raw["bn2"]))
    out = bn(conv(out, raw["w3"]), raw["bn3"])
    res = x_nchw
    if raw["wd"] is not None:
        res = bn(conv(x_nchw, raw["wd"], s=stride), raw["bnd"])
    return jax.nn.relu(out + res)


if __name__ == "__main__":
    key = jax.random.PRNGKey(0)
    N, H, W = 2, 16, 16
    configs = [
        (8, 4, 2),    # stride-2 block -> 1x1 strided downsample path exercised
        (16, 4, 1),   # inplanes == planes*4, stride 1 -> identity shortcut path
    ]

    for idx, (inplanes, planes, stride) in enumerate(configs):
        kx, kp = jax.random.split(jax.random.fold_in(key, idx))
        x = jax.random.normal(kx, (N, inplanes, H, W), dtype=jnp.float32)  # NCHW
        raw = make_params(kp, inplanes, planes, stride)
        params = fold_params(raw)

        # Small max_tile_pixels so the multi-row-tile grid path is exercised.
        out = jax.block_until_ready(
            bottleneck_forward(x, params, stride, max_tile_pixels=128))
        ref = jax.block_until_ready(ref_forward(x, raw, stride))

        ho = (H - 1) // stride + 1
        assert out.shape == (N, planes * 4, ho, ho), out.shape
        # bf16 MXU inputs / bf16 output with f32 accumulation vs f32 reference.
        np.testing.assert_allclose(np.asarray(out), np.asarray(ref),
                                   rtol=2e-2, atol=2e-2)

    print("KERNEL_OK")
</pallas_src>

<mosaic_0001>
module attributes {stable_mosaic.version = 11 : i64} {
  func.func @_bottleneck_kernel(%arg0: i32, %arg1: i32, %arg2: memref<1x4x168x8xbf16, #tpu.memory_space<vmem>>, %arg3: memref<8x4xbf16, #tpu.memory_space<vmem>>, %arg4: memref<1x4xf32, #tpu.memory_space<vmem>>, %arg5: memref<9x4x4xbf16, #tpu.memory_space<vmem>>, %arg6: memref<1x4xf32, #tpu.memory_space<vmem>>, %arg7: memref<4x16xbf16, #tpu.memory_space<vmem>>, %arg8: memref<1x16xf32, #tpu.memory_space<vmem>>, %arg9: memref<8x16xbf16, #tpu.memory_space<vmem>>, %arg10: memref<1x16xf32, #tpu.memory_space<vmem>>, %arg11: memref<1x48x16xbf16, #tpu.memory_space<vmem>>, %arg12: memref<4x72x4xbf16, #tpu.memory_space<vmem>>) attributes {dimension_semantics = [#tpu.dimension_semantics<parallel>, #tpu.dimension_semantics<parallel>], iteration_bounds = array<i64: 2, 3>, scalar_prefetch = 0 : i64, scratch_operands = 1 : i64, tpu.core_type = #tpu.core_type<tc>, window_params = [{transform_indices = @transform_0, window_bounds = array<i64: 1, 4, 168, 8>}, {pipeline_mode = #tpu.pipeline_mode<synchronous>, transform_indices = @transform_1, window_bounds = array<i64: 8, 4>}, {pipeline_mode = #tpu.pipeline_mode<synchronous>, transform_indices = @transform_2, window_bounds = array<i64: 1, 4>}, {pipeline_mode = #tpu.pipeline_mode<synchronous>, transform_indices = @transform_3, window_bounds = array<i64: 9, 4, 4>}, {pipeline_mode = #tpu.pipeline_mode<synchronous>, transform_indices = @transform_4, window_bounds = array<i64: 1, 4>}, {pipeline_mode = #tpu.pipeline_mode<synchronous>, transform_indices = @transform_5, window_bounds = array<i64: 4, 16>}, {pipeline_mode = #tpu.pipeline_mode<synchronous>, transform_indices = @transform_6, window_bounds = array<i64: 1, 16>}, {pipeline_mode = #tpu.pipeline_mode<synchronous>, transform_indices = @transform_7, window_bounds = array<i64: 8, 16>}, {pipeline_mode = #tpu.pipeline_mode<synchronous>, transform_indices = @transform_8, window_bounds = array<i64: 1, 16>}, {transform_indices = @transform_9, window_bounds = array<i64: 1, 48, 16>}]} {
    %c3_i32 = arith.constant 3 : i32
    %0 = arith.muli %arg1, %c3_i32 : i32
    %c48_i32 = arith.constant 48 : i32
    %1 = arith.muli %arg1, %c48_i32 : i32
    %2 = tpu.assume_multiple %1, 16 : i32
    %3 = tpu.iota {dimensions = array<i32: 0>} : vector<72x1xi32>
    %c4_i32 = arith.constant 4 : i32
    %4 = vector.broadcast %c4_i32 : i32 to vector<72x1xi32>
    %5 = arith.shrsi %3, %4 : vector<72x1xi32>
    %6 = vector.broadcast %0 : i32 to vector<72x1xi32>
    %7 = arith.addi %5, %6 : vector<72x1xi32>
    %c15_i32 = arith.constant 15 : i32
    %8 = vector.broadcast %c15_i32 : i32 to vector<72x1xi32>
    %9 = arith.andi %3, %8 : vector<72x1xi32>
    %c0 = arith.constant 0 : index
    %c0_0 = arith.constant 0 : index
    %10 = vector.load %arg3[%c0, %c0_0] : memref<8x4xbf16, #tpu.memory_space<vmem>>, vector<8x4xbf16>
    %c0_1 = arith.constant 0 : index
    %c0_2 = arith.constant 0 : index
    %11 = vector.load %arg4[%c0_1, %c0_2] : memref<1x4xf32, #tpu.memory_space<vmem>>, vector<1x4xf32>
    %c0_3 = arith.constant 0 : index
    %c0_4 = arith.constant 0 : index
    %12 = arith.index_cast %2 : i32 to index
    %c0_5 = arith.constant 0 : index
    %13 = vector.load %arg2[%c0_3, %c0_4, %12, %c0_5] : memref<1x4x168x8xbf16, #tpu.memory_space<vmem>>, vector<1x1x72x8xbf16>
    %14 = vector.shape_cast %13 : vector<1x1x72x8xbf16> to vector<72x8xbf16>
    %cst = arith.constant dense<0.000000e+00> : vector<72x4xf32>
    %15 = tpu.matmul %14, %10, %cst {dimension_numbers = #tpu.dot_dimension_numbers<[1], [0], [0], [1], [0, 0, 1, 1], [], []>} : vector<72x8xbf16>, vector<8x4xbf16>, vector<72x4xf32> -> vector<72x4xf32>
    %16 = vector.broadcast %11 : vector<1x4xf32> to vector<72x4xf32>
    %17 = arith.addf %15, %16 : vector<72x4xf32>
    %cst_6 = arith.constant 0.000000e+00 : f32
    %18 = vector.broadcast %cst_6 : f32 to vector<72x4xf32>
    %19 = arith.maximumf %17, %18 : vector<72x4xf32>
    %c2_i32 = arith.constant 2 : i32
    %20 = vector.broadcast %c2_i32 : i32 to vector<72x1xi32>
    %21 = arith.muli %20, %7 : vector<72x1xi32>
    %c0_i32 = arith.constant 0 : i32
    %22 = vector.broadcast %c0_i32 : i32 to vector<72x1xi32>
    %23 = arith.addi %21, %22 : vector<72x1xi32>
    %c2_i32_7 = arith.constant 2 : i32
    %24 = vector.broadcast %c2_i32_7 : i32 to vector<72x1xi32>
    %25 = arith.muli %24, %9 : vector<72x1xi32>
    %c0_i32_8 = arith.constant 0 : i32
    %26 = vector.broadcast %c0_i32_8 : i32 to vector<72x1xi32>
    %27 = arith.addi %25, %26 : vector<72x1xi32>
    %c1_i32 = arith.constant 1 : i32
    %28 = vector.broadcast %c1_i32 : i32 to vector<72x1xi32>
    %29 = arith.cmpi sge, %23, %28 : vector<72x1xi32>
    %c16_i32 = arith.constant 16 : i32
    %30 = vector.broadcast %c16_i32 : i32 to vector<72x1xi32>
    %31 = arith.cmpi sle, %23, %30 : vector<72x1xi32>
    %32 = arith.andi %29, %31 : vector<72x1xi1>
    %c1_i32_9 = arith.constant 1 : i32
    %33 = vector.broadcast %c1_i32_9 : i32 to vector<72x1xi32>
    %34 = arith.cmpi sge, %27, %33 : vector<72x1xi32>
    %35 = arith.andi %32, %34 : vector<72x1xi1>
    %c16_i32_10 = arith.constant 16 : i32
    %36 = vector.broadcast %c16_i32_10 : i32 to vector<72x1xi32>
    %37 = arith.cmpi sle, %27, %36 : vector<72x1xi32>
    %38 = arith.andi %35, %37 : vector<72x1xi1>
    %cst_11 = arith.constant 0.000000e+00 : f32
    %39 = vector.shape_cast %38 : vector<72x1xi1> to vector<72x1xi1>
    %40 = vector.broadcast %39 : vector<72x1xi1> to vector<72x4xi1>
    %41 = vector.broadcast %cst_11 : f32 to vector<72x4xf32>
    %42 = arith.select %40, %19, %41 : vector<72x4xi1>, vector<72x4xf32>
    %43 = arith.truncf %42 : vector<72x4xf32> to vector<72x4xbf16>
    %c0_12 = arith.constant 0 : index
    %c0_13 = arith.constant 0 : index
    %c0_14 = arith.constant 0 : index
    %44 = vector.load %arg12[%c0_12, %c0_13, %c0_14] : memref<4x72x4xbf16, #tpu.memory_space<vmem>>, vector<1x72x4xbf16>
    %45 = vector.shape_cast %44 : vector<1x72x4xbf16> to vector<72x4xbf16>
    %46 = vector.shape_cast %43 : vector<72x4xbf16> to vector<1x72x4xbf16>
    tpu.vector_store %arg12[%c0_12, %c0_13, %c0_14], %46 {strides = array<i32>} : memref<4x72x4xbf16, #tpu.memory_space<vmem>>, vector<1x72x4xbf16>,
    %c0_15 = arith.constant 0 : index
    %c1 = arith.constant 1 : index
    %47 = arith.index_cast %2 : i32 to index
    %c0_16 = arith.constant 0 : index
    %48 = vector.load %arg2[%c0_15, %c1, %47, %c0_16] : memref<1x4x168x8xbf16, #tpu.memory_space<vmem>>, vector<1x1x72x8xbf16>
    %49 = vector.shape_cast %48 : vector<1x1x72x8xbf16> to vector<72x8xbf16>
    %cst_17 = arith.constant dense<0.000000e+00> : vector<72x4xf32>
    %50 = tpu.matmul %49, %10, %cst_17 {dimension_numbers = #tpu.dot_dimension_numbers<[1], [0], [0], [1], [0, 0, 1, 1], [], []>} : vector<72x8xbf16>, vector<8x4xbf16>, vector<72x4xf32> -> vector<72x4xf32>
    %51 = vector.broadcast %11 : vector<1x4xf32> to vector<72x4xf32>
    %52 = arith.addf %50, %51 : vector<72x4xf32>
    %cst_18 = arith.constant 0.000000e+00 : f32
    %53 = vector.broadcast %cst_18 : f32 to vector<72x4xf32>
    %54 = arith.maximumf %52, %53 : vector<72x4xf32>
    %c2_i32_19 = arith.constant 2 : i32
    %55 = vector.broadcast %c2_i32_19 : i32 to vector<72x1xi32>
    %56 = arith.muli %55, %7 : vector<72x1xi32>
    %c0_i32_20 = arith.constant 0 : i32
    %57 = vector.broadcast %c0_i32_20 : i32 to vector<72x1xi32>
    %58 = arith.addi %56, %57 : vector<72x1xi32>
    %c2_i32_21 = arith.constant 2 : i32
    %59 = vector.broadcast %c2_i32_21 : i32 to vector<72x1xi32>
    %60 = arith.muli %59, %9 : vector<72x1xi32>
    %c1_i32_22 = arith.constant 1 : i32
    %61 = vector.broadcast %c1_i32_22 : i32 to vector<72x1xi32>
    %62 = arith.addi %60, %61 : vector<72x1xi32>
    %c1_i32_23 = arith.constant 1 : i32
    %63 = vector.broadcast %c1_i32_23 : i32 to vector<72x1xi32>
    %64 = arith.cmpi sge, %58, %63 : vector<72x1xi32>
    %c16_i32_24 = arith.constant 16 : i32
    %65 = vector.broadcast %c16_i32_24 : i32 to vector<72x1xi32>
    %66 = arith.cmpi sle, %58, %65 : vector<72x1xi32>
    %67 = arith.andi %64, %66 : vector<72x1xi1>
    %c1_i32_25 = arith.constant 1 : i32
    %68 = vector.broadcast %c1_i32_25 : i32 to vector<72x1xi32>
    %69 = arith.cmpi sge, %62, %68 : vector<72x1xi32>
    %70 = arith.andi %67, %69 : vector<72x1xi1>
    %c16_i32_26 = arith.constant 16 : i32
    %71 = vector.broadcast %c16_i32_26 : i32 to vector<72x1xi32>
    %72 = arith.cmpi sle, %62, %71 : vector<72x1xi32>
    %73 = arith.andi %70, %72 : vector<72x1xi1>
    %cst_27 = arith.constant 0.000000e+00 : f32
    %74 = vector.shape_cast %73 : vector<72x1xi1> to vector<72x1xi1>
    %75 = vector.broadcast %74 : vector<72x1xi1> to vector<72x4xi1>
    %76 = vector.broadcast %cst_27 : f32 to vector<72x4xf32>
    %77 = arith.select %75, %54, %76 : vector<72x4xi1>, vector<72x4xf32>
    %78 = arith.truncf %77 : vector<72x4xf32> to vector<72x4xbf16>
    %c1_28 = arith.constant 1 : index
    %c0_29 = arith.constant 0 : index
    %c0_30 = arith.constant 0 : index
    %79 = vector.load %arg12[%c1_28, %c0_29, %c0_30] : memref<4x72x4xbf16, #tpu.memory_space<vmem>>, vector<1x72x4xbf16>
    %80 = vector.shape_cast %79 : vector<1x72x4xbf16> to vector<72x4xbf16>
    %81 = vector.shape_cast %78 : vector<72x4xbf16> to vector<1x72x4xbf16>
    tpu.vector_store %arg12[%c1_28, %c0_29, %c0_30], %81 {strides = array<i32>} : memref<4x72x4xbf16, #tpu.memory_space<vmem>>, vector<1x72x4xbf16>,
    %c0_31 = arith.constant 0 : index
    %c2 = arith.constant 2 : index
    %82 = arith.index_cast %2 : i32 to index
    %c0_32 = arith.constant 0 : index
    %83 = vector.load %arg2[%c0_31, %c2, %82, %c0_32] : memref<1x4x168x8xbf16, #tpu.memory_space<vmem>>, vector<1x1x72x8xbf16>
    %84 = vector.shape_cast %83 : vector<1x1x72x8xbf16> to vector<72x8xbf16>
    %cst_33 = arith.constant dense<0.000000e+00> : vector<72x4xf32>
    %85 = tpu.matmul %84, %10, %cst_33 {dimension_numbers = #tpu.dot_dimension_numbers<[1], [0], [0], [1], [0, 0, 1, 1], [], []>} : vector<72x8xbf16>, vector<8x4xbf16>, vector<72x4xf32> -> vector<72x4xf32>
    %86 = vector.broadcast %11 : vector<1x4xf32> to vector<72x4xf32>
    %87 = arith.addf %85, %86 : vector<72x4xf32>
    %cst_34 = arith.constant 0.000000e+00 : f32
    %88 = vector.broadcast %cst_34 : f32 to vector<72x4xf32>
    %89 = arith.maximumf %87, %88 : vector<72x4xf32>
    %c2_i32_35 = arith.constant 2 : i32
    %90 = vector.broadcast %c2_i32_35 : i32 to vector<72x1xi32>
    %91 = arith.muli %90, %7 : vector<72x1xi32>
    %c1_i32_36 = arith.constant 1 : i32
    %92 = vector.broadcast %c1_i32_36 : i32 to vector<72x1xi32>
    %93 = arith.addi %91, %92 : vector<72x1xi32>
    %c2_i32_37 = arith.constant 2 : i32
    %94 = vector.broadcast %c2_i32_37 : i32 to vector<72x1xi32>
    %95 = arith.muli %94, %9 : vector<72x1xi32>
    %c0_i32_38 = arith.constant 0 : i32
    %96 = vector.broadcast %c0_i32_38 : i32 to vector<72x1xi32>
    %97 = arith.addi %95, %96 : vector<72x1xi32>
    %c1_i32_39 = arith.constant 1 : i32
    %98 = vector.broadcast %c1_i32_39 : i32 to vector<72x1xi32>
    %99 = arith.cmpi sge, %93, %98 : vector<72x1xi32>
    %c16_i32_40 = arith.constant 16 : i32
    %100 = vector.broadcast %c16_i32_40 : i32 to vector<72x1xi32>
    %101 = arith.cmpi sle, %93, %100 : vector<72x1xi32>
    %102 = arith.andi %99, %101 : vector<72x1xi1>
    %c1_i32_41 = arith.constant 1 : i32
    %103 = vector.broadcast %c1_i32_41 : i32 to vector<72x1xi32>
    %104 = arith.cmpi sge, %97, %103 : vector<72x1xi32>
    %105 = arith.andi %102, %104 : vector<72x1xi1>
    %c16_i32_42 = arith.constant 16 : i32
    %106 = vector.broadcast %c16_i32_42 : i32 to vector<72x1xi32>
    %107 = arith.cmpi sle, %97, %106 : vector<72x1xi32>
    %108 = arith.andi %105, %107 : vector<72x1xi1>
    %cst_43 = arith.constant 0.000000e+00 : f32
    %109 = vector.shape_cast %108 : vector<72x1xi1> to vector<72x1xi1>
    %110 = vector.broadcast %109 : vector<72x1xi1> to vector<72x4xi1>
    %111 = vector.broadcast %cst_43 : f32 to vector<72x4xf32>
    %112 = arith.select %110, %89, %111 : vector<72x4xi1>, vector<72x4xf32>
    %113 = arith.truncf %112 : vector<72x4xf32> to vector<72x4xbf16>
    %c2_44 = arith.constant 2 : index
    %c0_45 = arith.constant 0 : index
    %c0_46 = arith.constant 0 : index
    %114 = vector.load %arg12[%c2_44, %c0_45, %c0_46] : memref<4x72x4xbf16, #tpu.memory_space<vmem>>, vector<1x72x4xbf16>
    %115 = vector.shape_cast %114 : vector<1x72x4xbf16> to vector<72x4xbf16>
    %116 = vector.shape_cast %113 : vector<72x4xbf16> to vector<1x72x4xbf16>
    tpu.vector_store %arg12[%c2_44, %c0_45, %c0_46], %116 {strides = array<i32>} : memref<4x72x4xbf16, #tpu.memory_space<vmem>>, vector<1x72x4xbf16>,
    %c0_47 = arith.constant 0 : index
    %c3 = arith.constant 3 : index
    %117 = arith.index_cast %2 : i32 to index
    %c0_48 = arith.constant 0 : index
    %118 = vector.load %arg2[%c0_47, %c3, %117, %c0_48] : memref<1x4x168x8xbf16, #tpu.memory_space<vmem>>, vector<1x1x72x8xbf16>
    %119 = vector.shape_cast %118 : vector<1x1x72x8xbf16> to vector<72x8xbf16>
    %cst_49 = arith.constant dense<0.000000e+00> : vector<72x4xf32>
    %120 = tpu.matmul %119, %10, %cst_49 {dimension_numbers = #tpu.dot_dimension_numbers<[1], [0], [0], [1], [0, 0, 1, 1], [], []>} : vector<72x8xbf16>, vector<8x4xbf16>, vector<72x4xf32> -> vector<72x4xf32>
    %121 = vector.broadcast %11 : vector<1x4xf32> to vector<72x4xf32>
    %122 = arith.addf %120, %121 : vector<72x4xf32>
    %cst_50 = arith.constant 0.000000e+00 : f32
    %123 = vector.broadcast %cst_50 : f32 to vector<72x4xf32>
    %124 = arith.maximumf %122, %123 : vector<72x4xf32>
    %c2_i32_51 = arith.constant 2 : i32
    %125 = vector.broadcast %c2_i32_51 : i32 to vector<72x1xi32>
    %126 = arith.muli %125, %7 : vector<72x1xi32>
    %c1_i32_52 = arith.constant 1 : i32
    %127 = vector.broadcast %c1_i32_52 : i32 to vector<72x1xi32>
    %128 = arith.addi %126, %127 : vector<72x1xi32>
    %c2_i32_53 = arith.constant 2 : i32
    %129 = vector.broadcast %c2_i32_53 : i32 to vector<72x1xi32>
    %130 = arith.muli %129, %9 : vector<72x1xi32>
    %c1_i32_54 = arith.constant 1 : i32
    %131 = vector.broadcast %c1_i32_54 : i32 to vector<72x1xi32>
    %132 = arith.addi %130, %131 : vector<72x1xi32>
    %c1_i32_55 = arith.constant 1 : i32
    %133 = vector.broadcast %c1_i32_55 : i32 to vector<72x1xi32>
    %134 = arith.cmpi sge, %128, %133 : vector<72x1xi32>
    %c16_i32_56 = arith.constant 16 : i32
    %135 = vector.broadcast %c16_i32_56 : i32 to vector<72x1xi32>
    %136 = arith.cmpi sle, %128, %135 : vector<72x1xi32>
    %137 = arith.andi %134, %136 : vector<72x1xi1>
    %c1_i32_57 = arith.constant 1 : i32
    %138 = vector.broadcast %c1_i32_57 : i32 to vector<72x1xi32>
    %139 = arith.cmpi sge, %132, %138 : vector<72x1xi32>
    %140 = arith.andi %137, %139 : vector<72x1xi1>
    %c16_i32_58 = arith.constant 16 : i32
    %141 = vector.broadcast %c16_i32_58 : i32 to vector<72x1xi32>
    %142 = arith.cmpi sle, %132, %141 : vector<72x1xi32>
    %143 = arith.andi %140, %142 : vector<72x1xi1>
    %cst_59 = arith.constant 0.000000e+00 : f32
    %144 = vector.shape_cast %143 : vector<72x1xi1> to vector<72x1xi1>
    %145 = vector.broadcast %144 : vector<72x1xi1> to vector<72x4xi1>
    %146 = vector.broadcast %cst_59 : f32 to vector<72x4xf32>
    %147 = arith.select %145, %124, %146 : vector<72x4xi1>, vector<72x4xf32>
    %148 = arith.truncf %147 : vector<72x4xf32> to vector<72x4xbf16>
    %c3_60 = arith.constant 3 : index
    %c0_61 = arith.constant 0 : index
    %c0_62 = arith.constant 0 : index
    %149 = vector.load %arg12[%c3_60, %c0_61, %c0_62] : memref<4x72x4xbf16, #tpu.memory_space<vmem>>, vector<1x72x4xbf16>
    %150 = vector.shape_cast %149 : vector<1x72x4xbf16> to vector<72x4xbf16>
    %151 = vector.shape_cast %148 : vector<72x4xbf16> to vector<1x72x4xbf16>
    tpu.vector_store %arg12[%c3_60, %c0_61, %c0_62], %151 {strides = array<i32>} : memref<4x72x4xbf16, #tpu.memory_space<vmem>>, vector<1x72x4xbf16>,
    %c0_63 = arith.constant 0 : index
    %c0_64 = arith.constant 0 : index
    %c0_65 = arith.constant 0 : index
    %152 = vector.load %arg12[%c0_63, %c0_64, %c0_65] : memref<4x72x4xbf16, #tpu.memory_space<vmem>>, vector<1x48x4xbf16>
    %153 = vector.shape_cast %152 : vector<1x48x4xbf16> to vector<48x4xbf16>
    %c0_66 = arith.constant 0 : index
    %c0_67 = arith.constant 0 : index
    %c0_68 = arith.constant 0 : index
    %154 = vector.load %arg5[%c0_66, %c0_67, %c0_68] : memref<9x4x4xbf16, #tpu.memory_space<vmem>>, vector<1x4x4xbf16>
    %155 = vector.shape_cast %154 : vector<1x4x4xbf16> to vector<4x4xbf16>
    %cst_69 = arith.constant dense<0.000000e+00> : vector<48x4xf32>
    %156 = tpu.matmul %153, %155, %cst_69 {dimension_numbers = #tpu.dot_dimension_numbers<[1], [0], [0], [1], [0, 0, 1, 1], [], []>} : vector<48x4xbf16>, vector<4x4xbf16>, vector<48x4xf32> -> vector<48x4xf32>
    %c1_70 = arith.constant 1 : index
    %c0_71 = arith.constant 0 : index
    %c0_72 = arith.constant 0 : index
    %157 = vector.load %arg12[%c1_70, %c0_71, %c0_72] : memref<4x72x4xbf16, #tpu.memory_space<vmem>>, vector<1x48x4xbf16>
    %158 = vector.shape_cast %157 : vector<1x48x4xbf16> to vector<48x4xbf16>
    %c1_73 = arith.constant 1 : index
    %c0_74 = arith.constant 0 : index
    %c0_75 = arith.constant 0 : index
    %159 = vector.load %arg5[%c1_73, %c0_74, %c0_75] : memref<9x4x4xbf16, #tpu.memory_space<vmem>>, vector<1x4x4xbf16>
    %160 = vector.shape_cast %159 : vector<1x4x4xbf16> to vector<4x4xbf16>
    %cst_76 = arith.constant dense<0.000000e+00> : vector<48x4xf32>
    %161 = tpu.matmul %158, %160, %cst_76 {dimension_numbers = #tpu.dot_dimension_numbers<[1], [0], [0], [1], [0, 0, 1, 1], [], []>} : vector<48x4xbf16>, vector<4x4xbf16>, vector<48x4xf32> -> vector<48x4xf32>
    %162 = arith.addf %156, %161 : vector<48x4xf32>
    %c0_77 = arith.constant 0 : index
    %c1_78 = arith.constant 1 : index
    %c0_79 = arith.constant 0 : index
    %163 = vector.load %arg12[%c0_77, %c1_78, %c0_79] : memref<4x72x4xbf16, #tpu.memory_space<vmem>>, vector<1x48x4xbf16>
    %164 = vector.shape_cast %163 : vector<1x48x4xbf16> to vector<48x4xbf16>
    %c2_80 = arith.constant 2 : index
    %c0_81 = arith.constant 0 : index
    %c0_82 = arith.constant 0 : index
    %165 = vector.load %arg5[%c2_80, %c0_81, %c0_82] : memref<9x4x4xbf16, #tpu.memory_space<vmem>>, vector<1x4x4xbf16>
    %166 = vector.shape_cast %165 : vector<1x4x4xbf16> to vector<4x4xbf16>
    %cst_83 = arith.constant dense<0.000000e+00> : vector<48x4xf32>
    %167 = tpu.matmul %164, %166, %cst_83 {dimension_numbers = #tpu.dot_dimension_numbers<[1], [0], [0], [1], [0, 0, 1, 1], [], []>} : vector<48x4xbf16>, vector<4x4xbf16>, vector<48x4xf32> -> vector<48x4xf32>
    %168 = arith.addf %162, %167 : vector<48x4xf32>
    %c2_84 = arith.constant 2 : index
    %c0_85 = arith.constant 0 : index
    %c0_86 = arith.constant 0 : index
    %169 = vector.load %arg12[%c2_84, %c0_85, %c0_86] : memref<4x72x4xbf16, #tpu.memory_space<vmem>>, vector<1x48x4xbf16>
    %170 = vector.shape_cast %169 : vector<1x48x4xbf16> to vector<48x4xbf16>
    %c3_87 = arith.constant 3 : index
    %c0_88 = arith.constant 0 : index
    %c0_89 = arith.constant 0 : index
    %171 = vector.load %arg5[%c3_87, %c0_88, %c0_89] : memref<9x4x4xbf16, #tpu.memory_space<vmem>>, vector<1x4x4xbf16>
    %172 = vector.shape_cast %171 : vector<1x4x4xbf16> to vector<4x4xbf16>
    %cst_90 = arith.constant dense<0.000000e+00> : vector<48x4xf32>
    %173 = tpu.matmul %170, %172, %cst_90 {dimension_numbers = #tpu.dot_dimension_numbers<[1], [0], [0], [1], [0, 0, 1, 1], [], []>} : vector<48x4xbf16>, vector<4x4xbf16>, vector<48x4xf32> -> vector<48x4xf32>
    %174 = arith.addf %168, %173 : vector<48x4xf32>
    %c3_91 = arith.constant 3 : index
    %c0_92 = arith.constant 0 : index
    %c0_93 = arith.constant 0 : index
    %175 = vector.load %arg12[%c3_91, %c0_92, %c0_93] : memref<4x72x4xbf16, #tpu.memory_space<vmem>>, vector<1x48x4xbf16>
    %176 = vector.shape_cast %175 : vector<1x48x4xbf16> to vector<48x4xbf16>
    %c4 = arith.constant 4 : index
    %c0_94 = arith.constant 0 : index
    %c0_95 = arith.constant 0 : index
    %177 = vector.load %arg5[%c4, %c0_94, %c0_95] : memref<9x4x4xbf16, #tpu.memory_space<vmem>>, vector<1x4x4xbf16>
    %178 = vector.shape_cast %177 : vector<1x4x4xbf16> to vector<4x4xbf16>
    %cst_96 = arith.constant dense<0.000000e+00> : vector<48x4xf32>
    %179 = tpu.matmul %176, %178, %cst_96 {dimension_numbers = #tpu.dot_dimension_numbers<[1], [0], [0], [1], [0, 0, 1, 1], [], []>} : vector<48x4xbf16>, vector<4x4xbf16>, vector<48x4xf32> -> vector<48x4xf32>
    %180 = arith.addf %174, %179 : vector<48x4xf32>
    %c2_97 = arith.constant 2 : index
    %c1_98 = arith.constant 1 : index
    %c0_99 = arith.constant 0 : index
    %181 = vector.load %arg12[%c2_97, %c1_98, %c0_99] : memref<4x72x4xbf16, #tpu.memory_space<vmem>>, vector<1x48x4xbf16>
    %182 = vector.shape_cast %181 : vector<1x48x4xbf16> to vector<48x4xbf16>
    %c5 = arith.constant 5 : index
    %c0_100 = arith.constant 0 : index
    %c0_101 = arith.constant 0 : index
    %183 = vector.load %arg5[%c5, %c0_100, %c0_101] : memref<9x4x4xbf16, #tpu.memory_space<vmem>>, vector<1x4x4xbf16>
    %184 = vector.shape_cast %183 : vector<1x4x4xbf16> to vector<4x4xbf16>
    %cst_102 = arith.constant dense<0.000000e+00> : vector<48x4xf32>
    %185 = tpu.matmul %182, %184, %cst_102 {dimension_numbers = #tpu.dot_dimension_numbers<[1], [0], [0], [1], [0, 0, 1, 1], [], []>} : vector<48x4xbf16>, vector<4x4xbf16>, vector<48x4xf32> -> vector<48x4xf32>
    %186 = arith.addf %180, %185 : vector<48x4xf32>
    %c0_103 = arith.constant 0 : index
    %c16 = arith.constant 16 : index
    %c0_104 = arith.constant 0 : index
    %187 = vector.load %arg12[%c0_103, %c16, %c0_104] : memref<4x72x4xbf16, #tpu.memory_space<vmem>>, vector<1x48x4xbf16>
    %188 = vector.shape_cast %187 : vector<1x48x4xbf16> to vector<48x4xbf16>
    %c6 = arith.constant 6 : index
    %c0_105 = arith.constant 0 : index
    %c0_106 = arith.constant 0 : index
    %189 = vector.load %arg5[%c6, %c0_105, %c0_106] : memref<9x4x4xbf16, #tpu.memory_space<vmem>>, vector<1x4x4xbf16>
    %190 = vector.shape_cast %189 : vector<1x4x4xbf16> to vector<4x4xbf16>
    %cst_107 = arith.constant dense<0.000000e+00> : vector<48x4xf32>
    %191 = tpu.matmul %188, %190, %cst_107 {dimension_numbers = #tpu.dot_dimension_numbers<[1], [0], [0], [1], [0, 0, 1, 1], [], []>} : vector<48x4xbf16>, vector<4x4xbf16>, vector<48x4xf32> -> vector<48x4xf32>
    %192 = arith.addf %186, %191 : vector<48x4xf32>
    %c1_108 = arith.constant 1 : index
    %c16_109 = arith.constant 16 : index
    %c0_110 = arith.constant 0 : index
    %193 = vector.load %arg12[%c1_108, %c16_109, %c0_110] : memref<4x72x4xbf16, #tpu.memory_space<vmem>>, vector<1x48x4xbf16>
    %194 = vector.shape_cast %193 : vector<1x48x4xbf16> to vector<48x4xbf16>
    %c7 = arith.constant 7 : index
    %c0_111 = arith.constant 0 : index
    %c0_112 = arith.constant 0 : index
    %195 = vector.load %arg5[%c7, %c0_111, %c0_112] : memref<9x4x4xbf16, #tpu.memory_space<vmem>>, vector<1x4x4xbf16>
    %196 = vector.shape_cast %195 : vector<1x4x4xbf16> to vector<4x4xbf16>
    %cst_113 = arith.constant dense<0.000000e+00> : vector<48x4xf32>
    %197 = tpu.matmul %194, %196, %cst_113 {dimension_numbers = #tpu.dot_dimension_numbers<[1], [0], [0], [1], [0, 0, 1, 1], [], []>} : vector<48x4xbf16>, vector<4x4xbf16>, vector<48x4xf32> -> vector<48x4xf32>
    %198 = arith.addf %192, %197 : vector<48x4xf32>
    %c0_114 = arith.constant 0 : index
    %c17 = arith.constant 17 : index
    %c0_115 = arith.constant 0 : index
    %199 = vector.load %arg12[%c0_114, %c17, %c0_115] : memref<4x72x4xbf16, #tpu.memory_space<vmem>>, vector<1x48x4xbf16>
    %200 = vector.shape_cast %199 : vector<1x48x4xbf16> to vector<48x4xbf16>
    %c8 = arith.constant 8 : index
    %c0_116 = arith.constant 0 : index
    %c0_117 = arith.constant 0 : index
    %201 = vector.load %arg5[%c8, %c0_116, %c0_117] : memref<9x4x4xbf16, #tpu.memory_space<vmem>>, vector<1x4x4xbf16>
    %202 = vector.shape_cast %201 : vector<1x4x4xbf16> to vector<4x4xbf16>
    %cst_118 = arith.constant dense<0.000000e+00> : vector<48x4xf32>
    %203 = tpu.matmul %200, %202, %cst_118 {dimension_numbers = #tpu.dot_dimension_numbers<[1], [0], [0], [1], [0, 0, 1, 1], [], []>} : vector<48x4xbf16>, vector<4x4xbf16>, vector<48x4xf32> -> vector<48x4xf32>
    %204 = arith.addf %198, %203 : vector<48x4xf32>
    %c0_119 = arith.constant 0 : index
    %c0_120 = arith.constant 0 : index
    %205 = vector.load %arg6[%c0_119, %c0_120] : memref<1x4xf32, #tpu.memory_space<vmem>>, vector<1x4xf32>
    %206 = vector.broadcast %205 : vector<1x4xf32> to vector<48x4xf32>
    %207 = arith.addf %204, %206 : vector<48x4xf32>
    %cst_121 = arith.constant 0.000000e+00 : f32
    %208 = vector.broadcast %cst_121 : f32 to vector<48x4xf32>
    %209 = arith.maximumf %207, %208 : vector<48x4xf32>
    %210 = arith.truncf %209 : vector<48x4xf32> to vector<48x4xbf16>
    %c0_i32_122 = arith.constant 0 : i32
    %211 = arith.addi %2, %c0_i32_122 : i32
    %c0_123 = arith.constant 0 : index
    %c3_124 = arith.constant 3 : index
    %212 = arith.index_cast %211 : i32 to index
    %c0_125 = arith.constant 0 : index
    %213 = vector.load %arg2[%c0_123, %c3_124, %212, %c0_125] : memref<1x4x168x8xbf16, #tpu.memory_space<vmem>>, vector<1x1x48x8xbf16>
    %214 = vector.shape_cast %213 : vector<1x1x48x8xbf16> to vector<48x8xbf16>
    %c0_126 = arith.constant 0 : index
    %c0_127 = arith.constant 0 : index
    %215 = vector.load %arg9[%c0_126, %c0_127] : memref<8x16xbf16, #tpu.memory_space<vmem>>, vector<8x16xbf16>
    %cst_128 = arith.constant dense<0.000000e+00> : vector<48x16xf32>
    %216 = tpu.matmul %214, %215, %cst_128 {dimension_numbers = #tpu.dot_dimension_numbers<[1], [0], [0], [1], [0, 0, 1, 1], [], []>} : vector<48x8xbf16>, vector<8x16xbf16>, vector<48x16xf32> -> vector<48x16xf32>
    %c0_129 = arith.constant 0 : index
    %c0_130 = arith.constant 0 : index
    %217 = vector.load %arg10[%c0_129, %c0_130] : memref<1x16xf32, #tpu.memory_space<vmem>>, vector<1x16xf32>
    %218 = vector.broadcast %217 : vector<1x16xf32> to vector<48x16xf32>
    %219 = arith.addf %216, %218 : vector<48x16xf32>
    %c0_131 = arith.constant 0 : index
    %c0_132 = arith.constant 0 : index
    %220 = vector.load %arg7[%c0_131, %c0_132] : memref<4x16xbf16, #tpu.memory_space<vmem>>, vector<4x16xbf16>
    %cst_133 = arith.constant dense<0.000000e+00> : vector<48x16xf32>
    %221 = tpu.matmul %210, %220, %cst_133 {dimension_numbers = #tpu.dot_dimension_numbers<[1], [0], [0], [1], [0, 0, 1, 1], [], []>} : vector<48x4xbf16>, vector<4x16xbf16>, vector<48x16xf32> -> vector<48x16xf32>
    %c0_134 = arith.constant 0 : index
    %c0_135 = arith.constant 0 : index
    %222 = vector.load %arg8[%c0_134, %c0_135] : memref<1x16xf32, #tpu.memory_space<vmem>>, vector<1x16xf32>
    %223 = vector.broadcast %222 : vector<1x16xf32> to vector<48x16xf32>
    %224 = arith.addf %221, %223 : vector<48x16xf32>
    %225 = arith.addf %224, %219 : vector<48x16xf32>
    %cst_136 = arith.constant 0.000000e+00 : f32
    %226 = vector.broadcast %cst_136 : f32 to vector<48x16xf32>
    %227 = arith.maximumf %225, %226 : vector<48x16xf32>
    %228 = arith.truncf %227 : vector<48x16xf32> to vector<48x16xbf16>
    %c0_137 = arith.constant 0 : index
    %c0_138 = arith.constant 0 : index
    %c0_139 = arith.constant 0 : index
    %229 = vector.load %arg11[%c0_137, %c0_138, %c0_139] : memref<1x48x16xbf16, #tpu.memory_space<vmem>>, vector<1x48x16xbf16>
    %230 = vector.shape_cast %229 : vector<1x48x16xbf16> to vector<48x16xbf16>
    %231 = vector.shape_cast %228 : vector<48x16xbf16> to vector<1x48x16xbf16>
    tpu.vector_store %arg11[%c0_137, %c0_138, %c0_139], %231 {strides = array<i32>} : memref<1x48x16xbf16, #tpu.memory_space<vmem>>, vector<1x48x16xbf16>,
    return
  }
  func.func @transform_0(%arg0: i32, %arg1: i32) -> (i32, i32, i32, i32) {
    %c0_i32 = arith.constant 0 : i32
    %c0_i32_0 = arith.constant 0 : i32
    %c0_i32_1 = arith.constant 0 : i32
    %c0_i32_2 = arith.constant 0 : i32
    return %arg0, %c0_i32, %c0_i32_0, %c0_i32_1 : i32, i32, i32, i32
  }
  func.func @transform_1(%arg0: i32, %arg1: i32) -> (i32, i32) {
    %c0_i32 = arith.constant 0 : i32
    %c0_i32_0 = arith.constant 0 : i32
    %c0_i32_1 = arith.constant 0 : i32
    return %c0_i32, %c0_i32_0 : i32, i32
  }
  func.func @transform_2(%arg0: i32, %arg1: i32) -> (i32, i32) {
    %c0_i32 = arith.constant 0 : i32
    %c0_i32_0 = arith.constant 0 : i32
    %c0_i32_1 = arith.constant 0 : i32
    return %c0_i32, %c0_i32_0 : i32, i32
  }
  func.func @transform_3(%arg0: i32, %arg1: i32) -> (i32, i32, i32) {
    %c0_i32 = arith.constant 0 : i32
    %c0_i32_0 = arith.constant 0 : i32
    %c0_i32_1 = arith.constant 0 : i32
    %c0_i32_2 = arith.constant 0 : i32
    return %c0_i32, %c0_i32_0, %c0_i32_1 : i32, i32, i32
  }
  func.func @transform_4(%arg0: i32, %arg1: i32) -> (i32, i32) {
    %c0_i32 = arith.constant 0 : i32
    %c0_i32_0 = arith.constant 0 : i32
    %c0_i32_1 = arith.constant 0 : i32
    return %c0_i32, %c0_i32_0 : i32, i32
  }
  func.func @transform_5(%arg0: i32, %arg1: i32) -> (i32, i32) {
    %c0_i32 = arith.constant 0 : i32
    %c0_i32_0 = arith.constant 0 : i32
    %c0_i32_1 = arith.constant 0 : i32
    return %c0_i32, %c0_i32_0 : i32, i32
  }
  func.func @transform_6(%arg0: i32, %arg1: i32) -> (i32, i32) {
    %c0_i32 = arith.constant 0 : i32
    %c0_i32_0 = arith.constant 0 : i32
    %c0_i32_1 = arith.constant 0 : i32
    return %c0_i32, %c0_i32_0 : i32, i32
  }
  func.func @transform_7(%arg0: i32, %arg1: i32) -> (i32, i32) {
    %c0_i32 = arith.constant 0 : i32
    %c0_i32_0 = arith.constant 0 : i32
    %c0_i32_1 = arith.constant 0 : i32
    return %c0_i32, %c0_i32_0 : i32, i32
  }
  func.func @transform_8(%arg0: i32, %arg1: i32) -> (i32, i32) {
    %c0_i32 = arith.constant 0 : i32
    %c0_i32_0 = arith.constant 0 : i32
    %c0_i32_1 = arith.constant 0 : i32
    return %c0_i32, %c0_i32_0 : i32, i32
  }
  func.func @transform_9(%arg0: i32, %arg1: i32) -> (i32, i32, i32) {
    %c0_i32 = arith.constant 0 : i32
    %c0_i32_0 = arith.constant 0 : i32
    return %arg0, %arg1, %c0_i32 : i32, i32, i32
  }
}

</mosaic_0001>

<llo_original>
// kernel: tpu_custom_call.1
$region0: #{tpu_custom_call.1}
  #allocation0 [shape = 'u32[]', space=smem, size = 0x4, offset = 0x4, fixed_abs, tag = 'smem constant byte address 0x4 - core index']
  #allocation1 [shape = 'u32[144,128]{1,0:T(1,128)}', space=vmem, size = 0x12000, scoped, tag = 'internal scratch']
  #allocation2 [shape = 'bf16[4,72,4]{2,1,0:T(8,128)(2,1)}', space=vmem, size = 0x12000, scoped, tag = 'scratch operand']
  %s0 = inlined_call_operand.vmem [shape: bf16[2,4,168,8], index: 0, kind: input, shape index: {}]
  %s1 = inlined_call_operand.vmem [shape: bf16[8,4], index: 1, kind: input, shape index: {}]
  %s2 = inlined_call_operand.vmem [shape: f32[1,4], index: 2, kind: input, shape index: {}]
  %s3 = inlined_call_operand.vmem [shape: bf16[9,4,4], index: 3, kind: input, shape index: {}]
  %s4 = inlined_call_operand.vmem [shape: f32[1,4], index: 4, kind: input, shape index: {}]
  %s5 = inlined_call_operand.vmem [shape: bf16[4,16], index: 5, kind: input, shape index: {}]
  %s6 = inlined_call_operand.vmem [shape: f32[1,16], index: 6, kind: input, shape index: {}]
  %s7 = inlined_call_operand.vmem [shape: bf16[8,16], index: 7, kind: input, shape index: {}]
  %s8 = inlined_call_operand.vmem [shape: f32[1,16], index: 8, kind: input, shape index: {}]
  %s9 = inlined_call_operand.vmem [shape: bf16[2,144,16], index: 9, kind: output, shape index: {}]
  %s10 = sld [smem:[#allocation0]]
  $region69: #{tpu_custom_call.1} parent=0
    _
  %s12 = ssub.s32 1, %s10
  %s13 = scalar_select 0, %s12, %s10
  loop: start=0, step=1, limit=8
  $region2: #{tpu_custom_call.1} parent=0 // loop_pre_header
    _
  $region3: #{tpu_custom_call.1} parent=0 // loop_header
    %s15 = sphi 0, %s19
    %p16 = scmp.ge.s32.totalorder %s15, 8
    %s22 = sphi 0, %s34
    %s23 = sphi 0, %s30
    %s24 = sphi 0, %s22
    %s25 = sphi 0, %s23
    %s26 = sphi 0, %s24
    %s27 = sphi 0, %s25
    %s37 = sphi 0, %s39
    %s40 = sphi 0, %s37
    %s41 = sphi 0, %s40
    %s57 = sphi 0, %s41
    %s61 = sphi 0, %s61
    %s63 = sphi 0, %s61
    %s64 = sphi 0, %s63
    %s78 = sphi 0, %s64
    %s82 = sphi 0, %s82
    %s84 = sphi 0, %s82
    %s85 = sphi 0, %s84
    %s99 = sphi 0, %s85
    %s103 = sphi 0, %s103
    %s105 = sphi 0, %s103
    %s106 = sphi 0, %s105
    %s120 = sphi 0, %s106
    %s124 = sphi 0, %s124
    %s126 = sphi 0, %s124
    %s127 = sphi 0, %s126
    %s141 = sphi 0, %s127
    %s145 = sphi 0, %s145
    %s147 = sphi 0, %s145
    %s148 = sphi 0, %s147
    %s162 = sphi 0, %s148
    %s166 = sphi 0, %s166
    %s168 = sphi 0, %s166
    %s169 = sphi 0, %s168
    %s183 = sphi 0, %s169
    %s187 = sphi 0, %s187
    %s189 = sphi 0, %s187
    %s190 = sphi 0, %s189
    %s204 = sphi 0, %s190
    %s208 = sphi 0, %s208
    %s210 = sphi 0, %s208
    %s211 = sphi 0, %s210
    %s225 = sphi 0, %s211
    %s233 = sphi 0, %s235
    %s236 = sphi 0, %s233
    %s237 = sphi 0, %s236
    %s253 = sphi 0, %s237
  $region4: #{tpu_custom_call.1} parent=0 // loop_header_branch
    %18 = sbr.rel (%p16) target = $region8
  $region5: #{tpu_custom_call.1} parent=0 // loop_body
    %s20 = ssub.s32 %s15, 1
    %s21 = ssub.s32 %s15, 2
    %s28 = sadd.s32 1, %s23
    %p29 = scmp.ge.s32.totalorder %s28, 3
    %s30 = scalar_select %p29, 0, %s28
    %s31 = sadd.s32 1, %s22
    %s32 = scalar_select %p29, %s31, %s22
    %p33 = scmp.ge.s32.totalorder %s32, 2
    %s34 = scalar_select %p33, 0, %s32
    %s35 = ssub.s32 %s22, %s34
    %p36 = scmp.eq.s32.totalorder %s35, 0
    %s38 = sadd.s32 %s37, 1
    %s39 = scalar_select %p36, %s37, %s38
    %p42 = pneg %p36
    %p43 = scmp.eq.s32.totalorder %s15, 5
    %p44 = por %p42, %p43
    %p45 = scmp.ne.s32.totalorder %s37, %s40
    %p46 = scmp.eq.s32.totalorder %s15, 0
    %p47 = por %p45, %p46
    %p48 = scmp.ne.s32.totalorder %s37, %s40
    %p49 = scmp.eq.s32.totalorder %s20, 5
    %p50 = por %p48, %p49
    %p51 = scmp.ne.s32.totalorder %s40, %s41
    %p52 = scmp.eq.s32.totalorder %s20, 0
    %p53 = por %p51, %p52
    %p54 = scmp.ne.s32.totalorder %s40, %s41
    %p55 = scmp.eq.s32.totalorder %s21, 5
    %p56 = por %p54, %p55
    %p58 = scmp.ne.s32.totalorder %s41, %s57
    %p59 = scmp.eq.s32.totalorder %s21, 0
    %p60 = por %p58, %p59
    %s62 = sadd.s32 %s61, 1
    %p65 = scmp.eq.s32.totalorder %s15, 5
    %p66 = scmp.ne.s32.totalorder %s61, %s63
    %p67 = scmp.eq.s32.totalorder %s15, 0
    %p68 = por %p66, %p67
    %p69 = scmp.ne.s32.totalorder %s61, %s63
    %p70 = scmp.eq.s32.totalorder %s20, 5
    %p71 = por %p69, %p70
    %p72 = scmp.ne.s32.totalorder %s63, %s64
    %p73 = scmp.eq.s32.totalorder %s20, 0
    %p74 = por %p72, %p73
    %p75 = scmp.ne.s32.totalorder %s63, %s64
    %p76 = scmp.eq.s32.totalorder %s21, 5
    %p77 = por %p75, %p76
    %p79 = scmp.ne.s32.totalorder %s64, %s78
    %p80 = scmp.eq.s32.totalorder %s21, 0
    %p81 = por %p79, %p80
    %s83 = sadd.s32 %s82, 1
    %p86 = scmp.eq.s32.totalorder %s15, 5
    %p87 = scmp.ne.s32.totalorder %s82, %s84
    %p88 = scmp.eq.s32.totalorder %s15, 0
    %p89 = por %p87, %p88
    %p90 = scmp.ne.s32.totalorder %s82, %s84
    %p91 = scmp.eq.s32.totalorder %s20, 5
    %p92 = por %p90, %p91
    %p93 = scmp.ne.s32.totalorder %s84, %s85
    %p94 = scmp.eq.s32.totalorder %s20, 0
    %p95 = por %p93, %p94
    %p96 = scmp.ne.s32.totalorder %s84, %s85
    %p97 = scmp.eq.s32.totalorder %s21, 5
    %p98 = por %p96, %p97
    %p100 = scmp.ne.s32.totalorder %s85, %s99
    %p101 = scmp.eq.s32.totalorder %s21, 0
    %p102 = por %p100, %p101
    %s104 = sadd.s32 %s103, 1
    %p107 = scmp.eq.s32.totalorder %s15, 5
    %p108 = scmp.ne.s32.totalorder %s103, %s105
    %p109 = scmp.eq.s32.totalorder %s15, 0
    %p110 = por %p108, %p109
    %p111 = scmp.ne.s32.totalorder %s103, %s105
    %p112 = scmp.eq.s32.totalorder %s20, 5
    %p113 = por %p111, %p112
    %p114 = scmp.ne.s32.totalorder %s105, %s106
    %p115 = scmp.eq.s32.totalorder %s20, 0
    %p116 = por %p114, %p115
    %p117 = scmp.ne.s32.totalorder %s105, %s106
    %p118 = scmp.eq.s32.totalorder %s21, 5
    %p119 = por %p117, %p118
    %p121 = scmp.ne.s32.totalorder %s106, %s120
    %p122 = scmp.eq.s32.totalorder %s21, 0
    %p123 = por %p121, %p122
    %s125 = sadd.s32 %s124, 1
    %p128 = scmp.eq.s32.totalorder %s15, 5
    %p129 = scmp.ne.s32.totalorder %s124, %s126
    %p130 = scmp.eq.s32.totalorder %s15, 0
    %p131 = por %p129, %p130
    %p132 = scmp.ne.s32.totalorder %s124, %s126
    %p133 = scmp.eq.s32.totalorder %s20, 5
    %p134 = por %p132, %p133
    %p135 = scmp.ne.s32.totalorder %s126, %s127
    %p136 = scmp.eq.s32.totalorder %s20, 0
    %p137 = por %p135, %p136
    %p138 = scmp.ne.s32.totalorder %s126, %s127
    %p139 = scmp.eq.s32.totalorder %s21, 5
    %p140 = por %p138, %p139
    %p142 = scmp.ne.s32.totalorder %s127, %s141
    %p143 = scmp.eq.s32.totalorder %s21, 0
    %p144 = por %p142, %p143
    %s146 = sadd.s32 %s145, 1
    %p149 = scmp.eq.s32.totalorder %s15, 5
    %p150 = scmp.ne.s32.totalorder %s145, %s147
    %p151 = scmp.eq.s32.totalorder %s15, 0
    %p152 = por %p150, %p151
    %p153 = scmp.ne.s32.totalorder %s145, %s147
    %p154 = scmp.eq.s32.totalorder %s20, 5
    %p155 = por %p153, %p154
    %p156 = scmp.ne.s32.totalorder %s147, %s148
    %p157 = scmp.eq.s32.totalorder %s20, 0
    %p158 = por %p156, %p157
    %p159 = scmp.ne.s32.totalorder %s147, %s148
    %p160 = scmp.eq.s32.totalorder %s21, 5
    %p161 = por %p159, %p160
    %p163 = scmp.ne.s32.totalorder %s148, %s162
    %p164 = scmp.eq.s32.totalorder %s21, 0
    %p165 = por %p163, %p164
    %s167 = sadd.s32 %s166, 1
    %p170 = scmp.eq.s32.totalorder %s15, 5
    %p171 = scmp.ne.s32.totalorder %s166, %s168
    %p172 = scmp.eq.s32.totalorder %s15, 0
    %p173 = por %p171, %p172
    %p174 = scmp.ne.s32.totalorder %s166, %s168
    %p175 = scmp.eq.s32.totalorder %s20, 5
    %p176 = por %p174, %p175
    %p177 = scmp.ne.s32.totalorder %s168, %s169
    %p178 = scmp.eq.s32.totalorder %s20, 0
    %p179 = por %p177, %p178
    %p180 = scmp.ne.s32.totalorder %s168, %s169
    %p181 = scmp.eq.s32.totalorder %s21, 5
    %p182 = por %p180, %p181
    %p184 = scmp.ne.s32.totalorder %s169, %s183
    %p185 = scmp.eq.s32.totalorder %s21, 0
    %p186 = por %p184, %p185
    %s188 = sadd.s32 %s187, 1
    %p191 = scmp.eq.s32.totalorder %s15, 5
    %p192 = scmp.ne.s32.totalorder %s187, %s189
    %p193 = scmp.eq.s32.totalorder %s15, 0
    %p194 = por %p192, %p193
    %p195 = scmp.ne.s32.totalorder %s187, %s189
    %p196 = scmp.eq.s32.totalorder %s20, 5
    %p197 = por %p195, %p196
    %p198 = scmp.ne.s32.totalorder %s189, %s190
    %p199 = scmp.eq.s32.totalorder %s20, 0
    %p200 = por %p198, %p199
    %p201 = scmp.ne.s32.totalorder %s189, %s190
    %p202 = scmp.eq.s32.totalorder %s21, 5
    %p203 = por %p201, %p202
    %p205 = scmp.ne.s32.totalorder %s190, %s204
    %p206 = scmp.eq.s32.totalorder %s21, 0
    %p207 = por %p205, %p206
    %s209 = sadd.s32 %s208, 1
    %p212 = scmp.eq.s32.totalorder %s15, 5
    %p213 = scmp.ne.s32.totalorder %s208, %s210
    %p214 = scmp.eq.s32.totalorder %s15, 0
    %p215 = por %p213, %p214
    %p216 = scmp.ne.s32.totalorder %s208, %s210
    %p217 = scmp.eq.s32.totalorder %s20, 5
    %p218 = por %p216, %p217
    %p219 = scmp.ne.s32.totalorder %s210, %s211
    %p220 = scmp.eq.s32.totalorder %s20, 0
    %p221 = por %p219, %p220
    %p222 = scmp.ne.s32.totalorder %s210, %s211
    %p223 = scmp.eq.s32.totalorder %s21, 5
    %p224 = por %p222, %p223
    %p226 = scmp.ne.s32.totalorder %s211, %s225
    %p227 = scmp.eq.s32.totalorder %s21, 0
    %p228 = por %p226, %p227
    %s229 = ssub.s32 %s22, %s34
    %s230 = ssub.s32 %s23, %s30
    %s231 = sor.u32 %s229, %s230
    %p232 = scmp.eq.s32.totalorder %s231, 0
    %s234 = sadd.s32 %s233, 1
    %s235 = scalar_select %p232, %s233, %s234
    %p238 = pneg %p232
    %p239 = scmp.eq.s32.totalorder %s15, 5
    %p240 = por %p238, %p239
    %p241 = scmp.ne.s32.totalorder %s233, %s236
    %p242 = scmp.eq.s32.totalorder %s15, 0
    %p243 = por %p241, %p242
    %p244 = scmp.ne.s32.totalorder %s233, %s236
    %p245 = scmp.eq.s32.totalorder %s20, 5
    %p246 = por %p244, %p245
    %p247 = scmp.ne.s32.totalorder %s236, %s237
    %p248 = scmp.eq.s32.totalorder %s20, 0
    %p249 = por %p247, %p248
    %p250 = scmp.ne.s32.totalorder %s236, %s237
    %p251 = scmp.eq.s32.totalorder %s21, 5
    %p252 = por %p250, %p251
    %p254 = scmp.ne.s32.totalorder %s237, %s253
    %p255 = scmp.eq.s32.totalorder %s21, 0
    %p256 = por %p254, %p255
    %p257 = scmp.le.s32.totalorder 1, %s15
    %p258 = scmp.lt.s32.totalorder %s15, 7
    %p259 = pnand %p257, %p258
    %p260 = pneg %p259
    // Predicated region
    $region9: #{tpu_custom_call.1} parent=5 // pred_check
      _
    $region10: #{tpu_custom_call.1} parent=5 // pred_check_branch
      %262 = sbr.rel (%p259) target = $region12
    $region11: #{tpu_custom_call.1} parent=5 // pred_region
      %s263 = ssub.s32 %s15, 1
      // Predicated region
      $region13: #{tpu_custom_call.1} parent=11 // pred_check
        %p264 = pneg %p74
      $region14: #{tpu_custom_call.1} parent=11 // pred_check_branch
        %266 = sbr.rel (%p264) target = $region16
      $region15: #{tpu_custom_call.1} parent=11 // pred_region
        _
      $region16: #{tpu_custom_call.1} parent=11 // pred_fallthru
        _
      // Predicated region
      $region17: #{tpu_custom_call.1} parent=11 // pred_check
        %p267 = pneg %p95
      $region18: #{tpu_custom_call.1} parent=11 // pred_check_branch
        %269 = sbr.rel (%p267) target = $region20
      $region19: #{tpu_custom_call.1} parent=11 // pred_region
        _
      $region20: #{tpu_custom_call.1} parent=11 // pred_fallthru
        _
      // Predicated region
      $region21: #{tpu_custom_call.1} parent=11 // pred_check
        %p270 = pneg %p116
      $region22: #{tpu_custom_call.1} parent=11 // pred_check_branch
        %272 = sbr.rel (%p270) target = $region24
      $region23: #{tpu_custom_call.1} parent=11 // pred_region
        _
      $region24: #{tpu_custom_call.1} parent=11 // pred_fallthru
        _
      // Predicated region
      $region25: #{tpu_custom_call.1} parent=11 // pred_check
        %p273 = pneg %p137
      $region26: #{tpu_custom_call.1} parent=11 // pred_check_branch
        %275 = sbr.rel (%p273) target = $region28
      $region27: #{tpu_custom_call.1} parent=11 // pred_region
        _
      $region28: #{tpu_custom_call.1} parent=11 // pred_fallthru
        _
      // Predicated region
      $region29: #{tpu_custom_call.1} parent=11 // pred_check
        %p276 = pneg %p158
      $region30: #{tpu_custom_call.1} parent=11 // pred_check_branch
        %278 = sbr.rel (%p276) target = $region32
      $region31: #{tpu_custom_call.1} parent=11 // pred_region
        _
      $region32: #{tpu_custom_call.1} parent=11 // pred_fallthru
        _
      // Predicated region
      $region33: #{tpu_custom_call.1} parent=11 // pred_check
        %p279 = pneg %p179
      $region34: #{tpu_custom_call.1} parent=11 // pred_check_branch
        %281 = sbr.rel (%p279) target = $region36
      $region35: #{tpu_custom_call.1} parent=11 // pred_region
        _
      $region36: #{tpu_custom_call.1} parent=11 // pred_fallthru
        _
      // Predicated region
      $region37: #{tpu_custom_call.1} parent=11 // pred_check
        %p282 = pneg %p200
      $region38: #{tpu_custom_call.1} parent=11 // pred_check_branch
        %284 = sbr.rel (%p282) target = $region40
      $region39: #{tpu_custom_call.1} parent=11 // pred_region
        _
      $region40: #{tpu_custom_call.1} parent=11 // pred_fallthru
        _
      // Predicated region
      $region41: #{tpu_custom_call.1} parent=11 // pred_check
        %p285 = pneg %p221
      $region42: #{tpu_custom_call.1} parent=11 // pred_check_branch
        %287 = sbr.rel (%p285) target = $region44
      $region43: #{tpu_custom_call.1} parent=11 // pred_region
        _
      $region44: #{tpu_custom_call.1} parent=11 // pred_fallthru
        _
    $region12: #{tpu_custom_call.1} parent=5 // pred_fallthru
      _
    %p288 = scmp.lt.s32.totalorder %s15, 6
    // Predicated region
    $region45: #{tpu_custom_call.1} parent=5 // pred_check
      %p289 = pneg %p288
    $region46: #{tpu_custom_call.1} parent=5 // pred_check_branch
      %291 = sbr.rel (%p289) target = $region48
    $region47: #{tpu_custom_call.1} parent=5 // pred_region
      // Predicated region
      $region49: #{tpu_custom_call.1} parent=47 // pred_check
        %p292 = pneg %p47
      $region50: #{tpu_custom_call.1} parent=47 // pred_check_branch
        %294 = sbr.rel (%p292) target = $region52
      $region51: #{tpu_custom_call.1} parent=47 // pred_region
        %p295 = scmp.lt.s32.totalorder %s22, 1
        %s296 = scalar_select %p295, %s22, 1
        %s297 = smul.addr %s296, 84
        %s298 = smul.addr %s297, 4
        %s299 = scalar_lea.vmem %s0, %s298
      $region52: #{tpu_custom_call.1} parent=47 // pred_fallthru
        _
    $region48: #{tpu_custom_call.1} parent=5 // pred_fallthru
      _
    %p300 = scmp.le.s32.totalorder 1, %s15
    %p301 = scmp.lt.s32.totalorder %s15, 7
    %p302 = pnand %p300, %p301
    %p303 = pneg %p302
    // Predicated region
    $region53: #{tpu_custom_call.1} parent=5 // pred_check
      _
    $region54: #{tpu_custom_call.1} parent=5 // pred_check_branch
      %305 = sbr.rel (%p302) target = $region56
    $region55: #{tpu_custom_call.1} parent=5 // pred_region
      %s306 = ssub.s32 %s15, 1
      %p307 = scmp.lt.s32.totalorder %s24, 1
      %s308 = scalar_select %p307, %s24, 1
      %s309 = smul.addr %s308, 84
      %s310 = smul.addr %s309, 4
      %s311 = scalar_lea.vmem %s0, %s310
      %p312 = pneg %p53
      %p313 = pneg %p50
      %p314 = pneg %p74
      %p315 = pneg %p71
      %p316 = pneg %p95
      %p317 = pneg %p92
      %p318 = pneg %p116
      %p319 = pneg %p113
      %p320 = pneg %p137
      %p321 = pneg %p134
      %p322 = pneg %p158
      %p323 = pneg %p155
      %p324 = pneg %p179
      %p325 = pneg %p176
      %p326 = pneg %p200
      %p327 = pneg %p197
      %p328 = pneg %p221
      %p329 = pneg %p218
      %p330 = pneg %p249
      %p331 = pneg %p246
      %s332 = smul.u32 6, %s25
      %p333 = scmp.lt.s32.totalorder %s24, 1
      %s334 = scalar_select %p333, %s24, 1
      %p335 = scmp.lt.s32.totalorder %s332, 17
      %s336 = scalar_select %p335, %s332, 17
      %s337 = smul.addr %s334, 18
      %s338 = sadd.s32 %s336, %s337
      %s339 = smul.addr %s338, 4
      %s340 = scalar_lea.vmem %s9, %s339
      %p341 = scmp.lt.s32.totalorder %s24, 1
      %s342 = scalar_select %p341, %s24, 1
      %s343 = smul.addr %s342, 84
      %s344 = smul.addr %s343, 4
      %s345 = scalar_lea.vmem %s0, %s344
      %s346 = smul.u32 6, %s25
      %p347 = scmp.lt.s32.totalorder %s24, 1
      %s348 = scalar_select %p347, %s24, 1
      %p349 = scmp.lt.s32.totalorder %s346, 17
      %s350 = scalar_select %p349, %s346, 17
      %s351 = smul.addr %s348, 18
      %s352 = sadd.s32 %s350, %s351
      %s353 = smul.addr %s352, 4
      %s354 = scalar_lea.vmem %s9, %s353
      %s355 = smul.u32 6, %s25
      %s357 = smul.u32 %s25, 3
      %s358 = smul.u32 %s25, 48
      %v359 = vlaneseq
      %v360 = vshrl.u32 %v359, 7
      %v361 = vadd.s32 %v360, 8
      %v362 = vadd.s32 %v360, 16
      %v363 = vadd.s32 %v360, 24
      %v364 = vadd.s32 %v360, 32
      %v365 = vadd.s32 %v360, 40
      %v366 = vadd.s32 %v360, 48
      %v367 = vadd.s32 %v360, 56
      %v368 = vadd.s32 %v360, 64
      %v369 = vshra.s32 %v360, 4
      %v370 = vshra.s32 %v361, 4
      %v371 = vshra.s32 %v362, 4
      %v372 = vshra.s32 %v363, 4
      %v373 = vshra.s32 %v364, 4
      %v374 = vshra.s32 %v365, 4
      %v375 = vshra.s32 %v366, 4
      %v376 = vshra.s32 %v367, 4
      %v377 = vshra.s32 %v368, 4
      %v378 = vstv %s357
      %v379 = vadd.s32 %v369, %v378
      %v380 = vadd.s32 %v370, %v378
      %v381 = vadd.s32 %v371, %v378
      %v382 = vadd.s32 %v372, %v378
      %v383 = vadd.s32 %v373, %v378
      %v384 = vadd.s32 %v374, %v378
      %v385 = vadd.s32 %v375, %v378
      %v386 = vadd.s32 %v376, %v378
      %v387 = vadd.s32 %v377, %v378
      %v388 = vand.u32 %v360, 15
      %v389 = vand.u32 %v361, 15
      %v390 = vand.u32 %v362, 15
      %v391 = vand.u32 %v363, 15
      %v392 = vand.u32 %v364, 15
      %v393 = vand.u32 %v365, 15
      %v394 = vand.u32 %v366, 15
      %v395 = vand.u32 %v367, 15
      %v396 = vand.u32 %v368, 15
      %v397 = vld [vmem:[%s1] sm:$0xf]
      %v398 = vld [vmem:[%s2] sm:$0x1]
      %s399 = sshra.s32 %s358, 3
      %s400 = sand.u32 %s358, 7
      %s401 = smul.addr %s399, 4
      %s402 = scalar_lea.vmem %s345, %s401
      %v403 = vld [vmem:[%s402] sm:$0xf]
      %v404 = vld [vmem:[%s402 + $0x4] sm:$0xf]
      %v405 = vld [vmem:[%s402 + $0x8] sm:$0xf]
      %v406 = vld [vmem:[%s402 + $0xc] sm:$0xf]
      %v407 = vld [vmem:[%s402 + $0x10] sm:$0xf]
      %v408 = vld [vmem:[%s402 + $0x14] sm:$0xf]
      %v409 = vld [vmem:[%s402 + $0x18] sm:$0xf]
      %v410 = vld [vmem:[%s402 + $0x1c] sm:$0xf]
      %v411 = vld [vmem:[%s402 + $0x20] sm:$0xf]
      %v413 = vlaneseq
      %v414 = vshrl.u32 %v413, 7
      %v415 = vsub.s32 0, %v414
      %v416 = vrot.slane %v398, %v415
      %v427 = vunpack.c.l.b16 %v403
      %v428 = vunpack.c.l.b16 %v404
      %v429 = vunpack.c.l.b16 %v405
      %v430 = vunpack.c.l.b16 %v406
      %v431 = vunpack.c.l.b16 %v407
      %v432 = vunpack.c.l.b16 %v408
      %v433 = vunpack.c.l.b16 %v409
      %v434 = vunpack.c.l.b16 %v410
      %v435 = vunpack.c.l.b16 %v411
      %v436 = vpack.c.b16 %v428, %v427
      %v437 = vpack.c.b16 %v430, %v429
      %v438 = vpack.c.b16 %v432, %v431
      %v439 = vpack.c.b16 %v434, %v433
      %v440 = vpack.c.b16 %v435, %v435
      %vm441 = vcmask 64512
      %v443 = vsel %vm441, %v436, 0
      %v446 = vsel %vm441, %v437, 0
      %v449 = vsel %vm441, %v438, 0
      %v452 = vsel %vm441, %v439, 0
      %v455 = vsel %vm441, %v440, 0
      %vm457 = vcmask 1043456
      %v459 = vsel %vm457, %v397, 0
      %461 = vmatprep.subr.bf16.mxu0 0
      %462 = vmatpush1.bf16.msra.mxu0 %v459
      %463 = vmatprep.subr.bf16.mxu0 0
      %464 = vmatpush1.bf16.msra.mxu0 0
      %465 = vmatprep.subr.bf16.mxu0 0
      %466 = vmatpush1.bf16.msra.mxu0 0
      %467 = vmatprep.subr.bf16.mxu0 0
      %468 = vmatpush1.bf16.msra.mxu0 0
      %469 = vmatprep.subr.bf16.mxu0 0
      %470 = vmatpush1.bf16.msra.mxu0 0
      %471 = vmatprep.subr.bf16.mxu0 0
      %472 = vmatpush1.bf16.msra.mxu0 0
      %473 = vmatprep.subr.bf16.mxu0 0
      %474 = vmatpush1.bf16.msra.mxu0 0
      %475 = vmatprep.subr.bf16.mxu0 0
      %476 = vmatpush1.bf16.msra.mxu0 0
      %477 = vmatprep.subr.bf16.mxu0 0
      %478 = vmatpush1.bf16.msra.mxu0 0
      %479 = vmatprep.subr.bf16.mxu0 0
      %480 = vmatpush1.bf16.msra.mxu0 0
      %481 = vmatprep.subr.bf16.mxu0 0
      %482 = vmatpush1.bf16.msra.mxu0 0
      %483 = vmatprep.subr.bf16.mxu0 0
      %484 = vmatpush1.bf16.msra.mxu0 0
      %485 = vmatprep.subr.bf16.mxu0 0
      %486 = vmatpush1.bf16.msra.mxu0 0
      %487 = vmatprep.subr.bf16.mxu0 0
      %488 = vmatpush1.bf16.msra.mxu0 0
      %489 = vmatprep.subr.bf16.mxu0 0
      %490 = vmatpush1.bf16.msra.mxu0 0
      %491 = vmatprep.subr.bf16.mxu0 0
      %492 = vmatpush1.bf16.msra.mxu0 0
      %493 = vmatprep.mubr.bf16.mxu0 0
      %494 = vmatmul.mubr.bf16.gmra.mrb[0].mxu0 %v443
      %v495 = vpop.f32.mrb[0].mxu0
      %v496 = vadd.f32 %v416, %v495
      %v497 = vpop.f32.mrb[0].mxu0
      %v498 = vpop.f32.mrb[0].mxu0
      %v499 = vadd.f32 %v416, %v498
      %v500 = vpop.f32.mrb[0].mxu0
      %501 = vmatprep.mubr.bf16.mxu0 0
      %502 = vmatmul.mubr.bf16.gmra.mrb[0].mxu0 %v446
      %v503 = vpop.f32.mrb[0].mxu0
      %v504 = vadd.f32 %v416, %v503
      %v505 = vpop.f32.mrb[0].mxu0
      %v506 = vpop.f32.mrb[0].mxu0
      %v507 = vadd.f32 %v416, %v506
      %v508 = vpop.f32.mrb[0].mxu0
      %509 = vmatprep.mubr.bf16.mxu0 0
      %510 = vmatmul.mubr.bf16.gmra.mrb[0].mxu0 %v449
      %v511 = vpop.f32.mrb[0].mxu0
      %v512 = vadd.f32 %v416, %v511
      %v513 = vpop.f32.mrb[0].mxu0
      %v514 = vpop.f32.mrb[0].mxu0
      %v515 = vadd.f32 %v416, %v514
      %v516 = vpop.f32.mrb[0].mxu0
      %517 = vmatprep.mubr.bf16.mxu0 0
      %518 = vmatmul.mubr.bf16.gmra.mrb[0].mxu0 %v452
      %v519 = vpop.f32.mrb[0].mxu0
      %v520 = vadd.f32 %v416, %v519
      %v521 = vpop.f32.mrb[0].mxu0
      %v522 = vpop.f32.mrb[0].mxu0
      %v523 = vadd.f32 %v416, %v522
      %v524 = vpop.f32.mrb[0].mxu0
      %525 = vmatprep.mubr.bf16.mxu0 0
      %526 = vmatmul.mubr.bf16.gmra.mrb[0].mxu0 %v455
      %v527 = vpop.f32.mrb[0].mxu0
      %v528 = vadd.f32 %v416, %v527
      %v529 = vpop.f32.mrb[0].mxu0
      %v530 = vpop.f32.mrb[0].mxu0
      %v531 = vpop.f32.mrb[0].mxu0
      %532 = vdwg.mxu0
      %v533 = vmax.f32 %v496, 0.0
      %v534 = vmax.f32 %v499, 0.0
      %v535 = vmax.f32 %v504, 0.0
      %v536 = vmax.f32 %v507, 0.0
      %v537 = vmax.f32 %v512, 0.0
      %v538 = vmax.f32 %v515, 0.0
      %v539 = vmax.f32 %v520, 0.0
      %v540 = vmax.f32 %v523, 0.0
      %v541 = vmax.f32 %v528, 0.0
      %v542 = vmul.u32 %v379, 2
      %v543 = vmul.u32 %v380, 2
      %v544 = vmul.u32 %v381, 2
      %v545 = vmul.u32 %v382, 2
      %v546 = vmul.u32 %v383, 2
      %v547 = vmul.u32 %v384, 2
      %v548 = vmul.u32 %v385, 2
      %v549 = vmul.u32 %v386, 2
      %v550 = vmul.u32 %v387, 2
      %v551 = vmul.u32 %v388, 2
      %v552 = vmul.u32 %v389, 2
      %v553 = vmul.u32 %v390, 2
      %v554 = vmul.u32 %v391, 2
      %v555 = vmul.u32 %v392, 2
      %v556 = vmul.u32 %v393, 2
      %v557 = vmul.u32 %v394, 2
      %v558 = vmul.u32 %v395, 2
      %v559 = vmul.u32 %v396, 2
      %vm560 = vcmp.ge.s32.totalorder %v542, 1
      %vm561 = vcmp.ge.s32.totalorder %v543, 1
      %vm562 = vcmp.ge.s32.totalorder %v544, 1
      %vm563 = vcmp.ge.s32.totalorder %v545, 1
      %vm564 = vcmp.ge.s32.totalorder %v546, 1
      %vm565 = vcmp.ge.s32.totalorder %v547, 1
      %vm566 = vcmp.ge.s32.totalorder %v548, 1
      %vm567 = vcmp.ge.s32.totalorder %v549, 1
      %vm568 = vcmp.ge.s32.totalorder %v550, 1
      %vm569 = vcmp.le.s32.totalorder %v542, 16
      %vm570 = vcmp.le.s32.totalorder %v543, 16
      %vm571 = vcmp.le.s32.totalorder %v544, 16
      %vm572 = vcmp.le.s32.totalorder %v545, 16
      %vm573 = vcmp.le.s32.totalorder %v546, 16
      %vm574 = vcmp.le.s32.totalorder %v547, 16
      %vm575 = vcmp.le.s32.totalorder %v548, 16
      %vm576 = vcmp.le.s32.totalorder %v549, 16
      %vm577 = vcmp.le.s32.totalorder %v550, 16
      %vm578 = vmand %vm560, %vm569
      %vm579 = vmand %vm561, %vm570
      %vm580 = vmand %vm562, %vm571
      %vm581 = vmand %vm563, %vm572
      %vm582 = vmand %vm564, %vm573
      %vm583 = vmand %vm565, %vm574
      %vm584 = vmand %vm566, %vm575
      %vm585 = vmand %vm567, %vm576
      %vm586 = vmand %vm568, %vm577
      %vm587 = vcmp.ge.s32.totalorder %v551, 1
      %vm588 = vcmp.ge.s32.totalorder %v552, 1
      %vm589 = vcmp.ge.s32.totalorder %v553, 1
      %vm590 = vcmp.ge.s32.totalorder %v554, 1
      %vm591 = vcmp.ge.s32.totalorder %v555, 1
      %vm592 = vcmp.ge.s32.totalorder %v556, 1
      %vm593 = vcmp.ge.s32.totalorder %v557, 1
      %vm594 = vcmp.ge.s32.totalorder %v558, 1
      %vm595 = vcmp.ge.s32.totalorder %v559, 1
      %vm596 = vmand %vm578, %vm587
      %vm597 = vmand %vm579, %vm588
      %vm598 = vmand %vm580, %vm589
      %vm599 = vmand %vm581, %vm590
      %vm600 = vmand %vm582, %vm591
      %vm601 = vmand %vm583, %vm592
      %vm602 = vmand %vm584, %vm593
      %vm603 = vmand %vm585, %vm594
      %vm604 = vmand %vm586, %vm595
      %vm605 = vcmp.le.s32.totalorder %v551, 16
      %vm606 = vcmp.le.s32.totalorder %v552, 16
      %vm607 = vcmp.le.s32.totalorder %v553, 16
      %vm608 = vcmp.le.s32.totalorder %v554, 16
      %vm609 = vcmp.le.s32.totalorder %v555, 16
      %vm610 = vcmp.le.s32.totalorder %v556, 16
      %vm611 = vcmp.le.s32.totalorder %v557, 16
      %vm612 = vcmp.le.s32.totalorder %v558, 16
      %vm613 = vcmp.le.s32.totalorder %v559, 16
      %vm614 = vmand %vm596, %vm605
      %vm615 = vmand %vm597, %vm606
      %vm616 = vmand %vm598, %vm607
      %vm617 = vmand %vm599, %vm608
      %vm618 = vmand %vm600, %vm609
      %vm619 = vmand %vm601, %vm610
      %vm620 = vmand %vm602, %vm611
      %vm621 = vmand %vm603, %vm612
      %vm622 = vmand %vm604, %vm613
      %v623 = vsel %vm614, 1, 0
      %v624 = vsel %vm615, 1, 0
      %v625 = vsel %vm616, 1, 0
      %v626 = vsel %vm617, 1, 0
      %v627 = vsel %vm618, 1, 0
      %v628 = vsel %vm619, 1, 0
      %v629 = vsel %vm620, 1, 0
      %v630 = vsel %vm621, 1, 0
      %v631 = vsel %vm622, 1, 0
      %vm632 = vcmp.eq.s32.totalorder %v623, 1
      %vm633 = vcmp.eq.s32.totalorder %v624, 1
      %vm634 = vcmp.eq.s32.totalorder %v625, 1
      %vm635 = vcmp.eq.s32.totalorder %v626, 1
      %vm636 = vcmp.eq.s32.totalorder %v627, 1
      %vm637 = vcmp.eq.s32.totalorder %v628, 1
      %vm638 = vcmp.eq.s32.totalorder %v629, 1
      %vm639 = vcmp.eq.s32.totalorder %v630, 1
      %vm640 = vcmp.eq.s32.totalorder %v631, 1
      %v641 = vsel %vm632, %v533, 0.0
      %v642 = vsel %vm633, %v534, 0.0
      %v643 = vsel %vm634, %v535, 0.0
      %v644 = vsel %vm635, %v536, 0.0
      %v645 = vsel %vm636, %v537, 0.0
      %v646 = vsel %vm637, %v538, 0.0
      %v647 = vsel %vm638, %v539, 0.0
      %v648 = vsel %vm639, %v540, 0.0
      %v649 = vsel %vm640, %v541, 0.0
      %v650 = vpack.c.bf16 %v642, %v641
      %v651 = vpack.c.bf16 %v644, %v643
      %v652 = vpack.c.bf16 %v646, %v645
      %v653 = vpack.c.bf16 %v648, %v647
      %v654 = vpack.c.bf16 %v649, %v649
      %v660 = vunpack.c.l.b16 %v650
      %v661 = vunpack.c.h.b16 %v650
      %v662 = vunpack.c.l.b16 %v651
      %v663 = vunpack.c.h.b16 %v651
      %v664 = vunpack.c.l.b16 %v652
      %v665 = vunpack.c.h.b16 %v652
      %v666 = vunpack.c.l.b16 %v653
      %v667 = vunpack.c.h.b16 %v653
      %v668 = vunpack.c.l.b16 %v654
      %v669 = vpack.c.b16 %v660, %v660
      %v670 = vpack.c.b16 %v661, %v661
      %v671 = vpack.c.b16 %v662, %v662
      %v672 = vpack.c.b16 %v663, %v663
      %v673 = vpack.c.b16 %v664, %v664
      %v674 = vpack.c.b16 %v665, %v665
      %v675 = vpack.c.b16 %v666, %v666
      %v676 = vpack.c.b16 %v667, %v667
      %v677 = vpack.c.b16 %v668, %v668
      %vm687 = vcmask 27648
      %688 = vst.msk [vmem:[#allocation2] sm:$0xf] %vm687, %v669
      %689 = vst.msk [vmem:[#allocation2 + $0x4] sm:$0xf] %vm687, %v670
      %690 = vst.msk [vmem:[#allocation2 + $0x8] sm:$0xf] %vm687, %v671
      %691 = vst.msk [vmem:[#allocation2 + $0xc] sm:$0xf] %vm687, %v672
      %692 = vst.msk [vmem:[#allocation2 + $0x10] sm:$0xf] %vm687, %v673
      %693 = vst.msk [vmem:[#allocation2 + $0x14] sm:$0xf] %vm687, %v674
      %694 = vst.msk [vmem:[#allocation2 + $0x18] sm:$0xf] %vm687, %v675
      %695 = vst.msk [vmem:[#allocation2 + $0x1c] sm:$0xf] %vm687, %v676
      %696 = vst.msk [vmem:[#allocation2 + $0x20] sm:$0xf] %vm687, %v677
      %s697 = sadd.s32 %s399, 21
      %s698 = smul.addr %s697, 4
      %s699 = scalar_lea.vmem %s345, %s698
      %v700 = vld [vmem:[%s699] sm:$0xf]
      %v701 = vld [vmem:[%s699 + $0x4] sm:$0xf]
      %v702 = vld [vmem:[%s699 + $0x8] sm:$0xf]
      %v703 = vld [vmem:[%s699 + $0xc] sm:$0xf]
      %v704 = vld [vmem:[%s699 + $0x10] sm:$0xf]
      %v705 = vld [vmem:[%s699 + $0x14] sm:$0xf]
      %v706 = vld [vmem:[%s699 + $0x18] sm:$0xf]
      %v707 = vld [vmem:[%s699 + $0x1c] sm:$0xf]
      %v708 = vld [vmem:[%s699 + $0x20] sm:$0xf]
      %v718 = vunpack.c.l.b16 %v700
      %v719 = vunpack.c.l.b16 %v701
      %v720 = vunpack.c.l.b16 %v702
      %v721 = vunpack.c.l.b16 %v703
      %v722 = vunpack.c.l.b16 %v704
      %v723 = vunpack.c.l.b16 %v705
      %v724 = vunpack.c.l.b16 %v706
      %v725 = vunpack.c.l.b16 %v707
      %v726 = vunpack.c.l.b16 %v708
      %v727 = vpack.c.b16 %v719, %v718
      %v728 = vpack.c.b16 %v721, %v720
      %v729 = vpack.c.b16 %v723, %v722
      %v730 = vpack.c.b16 %v725, %v724
      %v731 = vpack.c.b16 %v726, %v726
      %v733 = vsel %vm441, %v727, 0
      %v736 = vsel %vm441, %v728, 0
      %v739 = vsel %vm441, %v729, 0
      %v742 = vsel %vm441, %v730, 0
      %v745 = vsel %vm441, %v731, 0
      %747 = vmatprep.subr.bf16.mxu0 0
      %748 = vmatpush1.bf16.msra.mxu0 %v459
      %749 = vmatprep.subr.bf16.mxu0 0
      %750 = vmatpush1.bf16.msra.mxu0 0
      %751 = vmatprep.subr.bf16.mxu0 0
      %752 = vmatpush1.bf16.msra.mxu0 0
      %753 = vmatprep.subr.bf16.mxu0 0
      %754 = vmatpush1.bf16.msra.mxu0 0
      %755 = vmatprep.subr.bf16.mxu0 0
      %756 = vmatpush1.bf16.msra.mxu0 0
      %757 = vmatprep.subr.bf16.mxu0 0
      %758 = vmatpush1.bf16.msra.mxu0 0
      %759 = vmatprep.subr.bf16.mxu0 0
      %760 = vmatpush1.bf16.msra.mxu0 0
      %761 = vmatprep.subr.bf16.mxu0 0
      %762 = vmatpush1.bf16.msra.mxu0 0
      %763 = vmatprep.subr.bf16.mxu0 0
      %764 = vmatpush1.bf16.msra.mxu0 0
      %765 = vmatprep.subr.bf16.mxu0 0
      %766 = vmatpush1.bf16.msra.mxu0 0
      %767 = vmatprep.subr.bf16.mxu0 0
      %768 = vmatpush1.bf16.msra.mxu0 0
      %769 = vmatprep.subr.bf16.mxu0 0
      %770 = vmatpush1.bf16.msra.mxu0 0
      %771 = vmatprep.subr.bf16.mxu0 0
      %772 = vmatpush1.bf16.msra.mxu0 0
      %773 = vmatprep.subr.bf16.mxu0 0
      %774 = vmatpush1.bf16.msra.mxu0 0
      %775 = vmatprep.subr.bf16.mxu0 0
      %776 = vmatpush1.bf16.msra.mxu0 0
      %777 = vmatprep.subr.bf16.mxu0 0
      %778 = vmatpush1.bf16.msra.mxu0 0
      %779 = vmatprep.mubr.bf16.mxu0 0
      %780 = vmatmul.mubr.bf16.gmra.mrb[0].mxu0 %v733
      %v781 = vpop.f32.mrb[0].mxu0
      %v782 = vadd.f32 %v416, %v781
      %v783 = vpop.f32.mrb[0].mxu0
      %v784 = vpop.f32.mrb[0].mxu0
      %v785 = vadd.f32 %v416, %v784
      %v786 = vpop.f32.mrb[0].mxu0
      %787 = vmatprep.mubr.bf16.mxu0 0
      %788 = vmatmul.mubr.bf16.gmra.mrb[0].mxu0 %v736
      %v789 = vpop.f32.mrb[0].mxu0
      %v790 = vadd.f32 %v416, %v789
      %v791 = vpop.f32.mrb[0].mxu0
      %v792 = vpop.f32.mrb[0].mxu0
      %v793 = vadd.f32 %v416, %v792
      %v794 = vpop.f32.mrb[0].mxu0
      %795 = vmatprep.mubr.bf16.mxu0 0
      %796 = vmatmul.mubr.bf16.gmra.mrb[0].mxu0 %v739
      %v797 = vpop.f32.mrb[0].mxu0
      %v798 = vadd.f32 %v416, %v797
      %v799 = vpop.f32.mrb[0].mxu0
      %v800 = vpop.f32.mrb[0].mxu0
      %v801 = vadd.f32 %v416, %v800
      %v802 = vpop.f32.mrb[0].mxu0
      %803 = vmatprep.mubr.bf16.mxu0 0
      %804 = vmatmul.mubr.bf16.gmra.mrb[0].mxu0 %v742
      %v805 = vpop.f32.mrb[0].mxu0
      %v806 = vadd.f32 %v416, %v805
      %v807 = vpop.f32.mrb[0].mxu0
      %v808 = vpop.f32.mrb[0].mxu0
      %v809 = vadd.f32 %v416, %v808
      %v810 = vpop.f32.mrb[0].mxu0
      %811 = vmatprep.mubr.bf16.mxu0 0
      %812 = vmatmul.mubr.bf16.gmra.mrb[0].mxu0 %v745
      %v813 = vpop.f32.mrb[0].mxu0
      %v814 = vadd.f32 %v416, %v813
      %v815 = vpop.f32.mrb[0].mxu0
      %v816 = vpop.f32.mrb[0].mxu0
      %v817 = vpop.f32.mrb[0].mxu0
      %818 = vdwg.mxu0
      %v819 = vmax.f32 %v782, 0.0
      %v820 = vmax.f32 %v785, 0.0
      %v821 = vmax.f32 %v790, 0.0
      %v822 = vmax.f32 %v793, 0.0
      %v823 = vmax.f32 %v798, 0.0
      %v824 = vmax.f32 %v801, 0.0
      %v825 = vmax.f32 %v806, 0.0
      %v826 = vmax.f32 %v809, 0.0
      %v827 = vmax.f32 %v814, 0.0
      %v828 = vadd.s32 %v551, 1
      %v829 = vadd.s32 %v552, 1
      %v830 = vadd.s32 %v553, 1
      %v831 = vadd.s32 %v554, 1
      %v832 = vadd.s32 %v555, 1
      %v833 = vadd.s32 %v556, 1
      %v834 = vadd.s32 %v557, 1
      %v835 = vadd.s32 %v558, 1
      %v836 = vadd.s32 %v559, 1
      %vm837 = vcmp.ge.s32.totalorder %v828, 1
      %vm838 = vcmp.ge.s32.totalorder %v829, 1
      %vm839 = vcmp.ge.s32.totalorder %v830, 1
      %vm840 = vcmp.ge.s32.totalorder %v831, 1
      %vm841 = vcmp.ge.s32.totalorder %v832, 1
      %vm842 = vcmp.ge.s32.totalorder %v833, 1
      %vm843 = vcmp.ge.s32.totalorder %v834, 1
      %vm844 = vcmp.ge.s32.totalorder %v835, 1
      %vm845 = vcmp.ge.s32.totalorder %v836, 1
      %vm846 = vmand %vm578, %vm837
      %vm847 = vmand %vm579, %vm838
      %vm848 = vmand %vm580, %vm839
      %vm849 = vmand %vm581, %vm840
      %vm850 = vmand %vm582, %vm841
      %vm851 = vmand %vm583, %vm842
      %vm852 = vmand %vm584, %vm843
      %vm853 = vmand %vm585, %vm844
      %vm854 = vmand %vm586, %vm845
      %vm855 = vcmp.le.s32.totalorder %v828, 16
      %vm856 = vcmp.le.s32.totalorder %v829, 16
      %vm857 = vcmp.le.s32.totalorder %v830, 16
      %vm858 = vcmp.le.s32.totalorder %v831, 16
      %vm859 = vcmp.le.s32.totalorder %v832, 16
      %vm860 = vcmp.le.s32.totalorder %v833, 16
      %vm861 = vcmp.le.s32.totalorder %v834, 16
      %vm862 = vcmp.le.s32.totalorder %v835, 16
      %vm863 = vcmp.le.s32.totalorder %v836, 16
      %vm864 = vmand %vm846, %vm855
      %vm865 = vmand %vm847, %vm856
      %vm866 = vmand %vm848, %vm857
      %vm867 = vmand %vm849, %vm858
      %vm868 = vmand %vm850, %vm859
      %vm869 = vmand %vm851, %vm860
      %vm870 = vmand %vm852, %vm861
      %vm871 = vmand %vm853, %vm862
      %vm872 = vmand %vm854, %vm863
      %v873 = vsel %vm864, 1, 0
      %v874 = vsel %vm865, 1, 0
      %v875 = vsel %vm866, 1, 0
      %v876 = vsel %vm867, 1, 0
      %v877 = vsel %vm868, 1, 0
      %v878 = vsel %vm869, 1, 0
      %v879 = vsel %vm870, 1, 0
      %v880 = vsel %vm871, 1, 0
      %v881 = vsel %vm872, 1, 0
      %vm882 = vcmp.eq.s32.totalorder %v873, 1
      %vm883 = vcmp.eq.s32.totalorder %v874, 1
      %vm884 = vcmp.eq.s32.totalorder %v875, 1
      %vm885 = vcmp.eq.s32.totalorder %v876, 1
      %vm886 = vcmp.eq.s32.totalorder %v877, 1
      %vm887 = vcmp.eq.s32.totalorder %v878, 1
      %vm888 = vcmp.eq.s32.totalorder %v879, 1
      %vm889 = vcmp.eq.s32.totalorder %v880, 1
      %vm890 = vcmp.eq.s32.totalorder %v881, 1
      %v891 = vsel %vm882, %v819, 0.0
      %v892 = vsel %vm883, %v820, 0.0
      %v893 = vsel %vm884, %v821, 0.0
      %v894 = vsel %vm885, %v822, 0.0
      %v895 = vsel %vm886, %v823, 0.0
      %v896 = vsel %vm887, %v824, 0.0
      %v897 = vsel %vm888, %v825, 0.0
      %v898 = vsel %vm889, %v826, 0.0
      %v899 = vsel %vm890, %v827, 0.0
      %v900 = vpack.c.bf16 %v892, %v891
      %v901 = vpack.c.bf16 %v894, %v893
      %v902 = vpack.c.bf16 %v896, %v895
      %v903 = vpack.c.bf16 %v898, %v897
      %v904 = vpack.c.bf16 %v899, %v899
      %v910 = vunpack.c.l.b16 %v900
      %v911 = vunpack.c.h.b16 %v900
      %v912 = vunpack.c.l.b16 %v901
      %v913 = vunpack.c.h.b16 %v901
      %v914 = vunpack.c.l.b16 %v902
      %v915 = vunpack.c.h.b16 %v902
      %v916 = vunpack.c.l.b16 %v903
      %v917 = vunpack.c.h.b16 %v903
      %v918 = vunpack.c.l.b16 %v904
      %v919 = vpack.c.b16 %v910, %v910
      %v920 = vpack.c.b16 %v911, %v911
      %v921 = vpack.c.b16 %v912, %v912
      %v922 = vpack.c.b16 %v913, %v913
      %v923 = vpack.c.b16 %v914, %v914
      %v924 = vpack.c.b16 %v915, %v915
      %v925 = vpack.c.b16 %v916, %v916
      %v926 = vpack.c.b16 %v917, %v917
      %v927 = vpack.c.b16 %v918, %v918
      %s937 = scalar_lea.vmem [#allocation2], 36
      %938 = vst.msk [vmem:[%s937] sm:$0xf] %vm687, %v919
      %939 = vst.msk [vmem:[%s937 + $0x4] sm:$0xf] %vm687, %v920
      %940 = vst.msk [vmem:[%s937 + $0x8] sm:$0xf] %vm687, %v921
      %941 = vst.msk [vmem:[%s937 + $0xc] sm:$0xf] %vm687, %v922
      %942 = vst.msk [vmem:[%s937 + $0x10] sm:$0xf] %vm687, %v923
      %943 = vst.msk [vmem:[%s937 + $0x14] sm:$0xf] %vm687, %v924
      %944 = vst.msk [vmem:[%s937 + $0x18] sm:$0xf] %vm687, %v925
      %945 = vst.msk [vmem:[%s937 + $0x1c] sm:$0xf] %vm687, %v926
      %946 = vst.msk [vmem:[%s937 + $0x20] sm:$0xf] %vm687, %v927
      %s947 = sadd.s32 %s399, 42
      %s948 = smul.addr %s947, 4
      %s949 = scalar_lea.vmem %s345, %s948
      %v950 = vld [vmem:[%s949] sm:$0xf]
      %v951 = vld [vmem:[%s949 + $0x4] sm:$0xf]
      %v952 = vld [vmem:[%s949 + $0x8] sm:$0xf]
      %v953 = vld [vmem:[%s949 + $0xc] sm:$0xf]
      %v954 = vld [vmem:[%s949 + $0x10] sm:$0xf]
      %v955 = vld [vmem:[%s949 + $0x14] sm:$0xf]
      %v956 = vld [vmem:[%s949 + $0x18] sm:$0xf]
      %v957 = vld [vmem:[%s949 + $0x1c] sm:$0xf]
      %v958 = vld [vmem:[%s949 + $0x20] sm:$0xf]
      %v968 = vunpack.c.l.b16 %v950
      %v969 = vunpack.c.l.b16 %v951
      %v970 = vunpack.c.l.b16 %v952
      %v971 = vunpack.c.l.b16 %v953
      %v972 = vunpack.c.l.b16 %v954
      %v973 = vunpack.c.l.b16 %v955
      %v974 = vunpack.c.l.b16 %v956
      %v975 = vunpack.c.l.b16 %v957
      %v976 = vunpack.c.l.b16 %v958
      %v977 = vpack.c.b16 %v969, %v968
      %v978 = vpack.c.b16 %v971, %v970
      %v979 = vpack.c.b16 %v973, %v972
      %v980 = vpack.c.b16 %v975, %v974
      %v981 = vpack.c.b16 %v976, %v976
      %v983 = vsel %vm441, %v977, 0
      %v986 = vsel %vm441, %v978, 0
      %v989 = vsel %vm441, %v979, 0
      %v992 = vsel %vm441, %v980, 0
      %v995 = vsel %vm441, %v981, 0
      %997 = vmatprep.subr.bf16.mxu0 0
      %998 = vmatpush1.bf16.msra.mxu0 %v459
      %999 = vmatprep.subr.bf16.mxu0 0
      %1000 = vmatpush1.bf16.msra.mxu0 0
      %1001 = vmatprep.subr.bf16.mxu0 0
      %1002 = vmatpush1.bf16.msra.mxu0 0
      %1003 = vmatprep.subr.bf16.mxu0 0
      %1004 = vmatpush1.bf16.msra.mxu0 0
      %1005 = vmatprep.subr.bf16.mxu0 0
      %1006 = vmatpush1.bf16.msra.mxu0 0
      %1007 = vmatprep.subr.bf16.mxu0 0
      %1008 = vmatpush1.bf16.msra.mxu0 0
      %1009 = vmatprep.subr.bf16.mxu0 0
      %1010 = vmatpush1.bf16.msra.mxu0 0
      %1011 = vmatprep.subr.bf16.mxu0 0
      %1012 = vmatpush1.bf16.msra.mxu0 0
      %1013 = vmatprep.subr.bf16.mxu0 0
      %1014 = vmatpush1.bf16.msra.mxu0 0
      %1015 = vmatprep.subr.bf16.mxu0 0
      %1016 = vmatpush1.bf16.msra.mxu0 0
      %1017 = vmatprep.subr.bf16.mxu0 0
      %1018 = vmatpush1.bf16.msra.mxu0 0
      %1019 = vmatprep.subr.bf16.mxu0 0
      %1020 = vmatpush1.bf16.msra.mxu0 0
      %1021 = vmatprep.subr.bf16.mxu0 0
      %1022 = vmatpush1.bf16.msra.mxu0 0
      %1023 = vmatprep.subr.bf16.mxu0 0
      %1024 = vmatpush1.bf16.msra.mxu0 0
      %1025 = vmatprep.subr.bf16.mxu0 0
      %1026 = vmatpush1.bf16.msra.mxu0 0
      %1027 = vmatprep.subr.bf16.mxu0 0
      %1028 = vmatpush1.bf16.msra.mxu0 0
      %1029 = vmatprep.mubr.bf16.mxu0 0
      %1030 = vmatmul.mubr.bf16.gmra.mrb[0].mxu0 %v983
      %v1031 = vpop.f32.mrb[0].mxu0
      %v1032 = vadd.f32 %v416, %v1031
      %v1033 = vpop.f32.mrb[0].mxu0
      %v1034 = vpop.f32.mrb[0].mxu0
      %v1035 = vadd.f32 %v416, %v1034
      %v1036 = vpop.f32.mrb[0].mxu0
      %1037 = vmatprep.mubr.bf16.mxu0 0
      %1038 = vmatmul.mubr.bf16.gmra.mrb[0].mxu0 %v986
      %v1039 = vpop.f32.mrb[0].mxu0
      %v1040 = vadd.f32 %v416, %v1039
      %v1041 = vpop.f32.mrb[0].mxu0
      %v1042 = vpop.f32.mrb[0].mxu0
      %v1043 = vadd.f32 %v416, %v1042
      %v1044 = vpop.f32.mrb[0].mxu0
      %1045 = vmatprep.mubr.bf16.mxu0 0
      %1046 = vmatmul.mubr.bf16.gmra.mrb[0].mxu0 %v989
      %v1047 = vpop.f32.mrb[0].mxu0
      %v1048 = vadd.f32 %v416, %v1047
      %v1049 = vpop.f32.mrb[0].mxu0
      %v1050 = vpop.f32.mrb[0].mxu0
      %v1051 = vadd.f32 %v416, %v1050
      %v1052 = vpop.f32.mrb[0].mxu0
      %1053 = vmatprep.mubr.bf16.mxu0 0
      %1054 = vmatmul.mubr.bf16.gmra.mrb[0].mxu0 %v992
      %v1055 = vpop.f32.mrb[0].mxu0
      %v1056 = vadd.f32 %v416, %v1055
      %v1057 = vpop.f32.mrb[0].mxu0
      %v1058 = vpop.f32.mrb[0].mxu0
      %v1059 = vadd.f32 %v416, %v1058
      %v1060 = vpop.f32.mrb[0].mxu0
      %1061 = vmatprep.mubr.bf16.mxu0 0
      %1062 = vmatmul.mubr.bf16.gmra.mrb[0].mxu0 %v995
      %v1063 = vpop.f32.mrb[0].mxu0
      %v1064 = vadd.f32 %v416, %v1063
      %v1065 = vpop.f32.mrb[0].mxu0
      %v1066 = vpop.f32.mrb[0].mxu0
      %v1067 = vpop.f32.mrb[0].mxu0
      %1068 = vdwg.mxu0
      %v1069 = vmax.f32 %v1032, 0.0
      %v1070 = vmax.f32 %v1035, 0.0
      %v1071 = vmax.f32 %v1040, 0.0
      %v1072 = vmax.f32 %v1043, 0.0
      %v1073 = vmax.f32 %v1048, 0.0
      %v1074 = vmax.f32 %v1051, 0.0
      %v1075 = vmax.f32 %v1056, 0.0
      %v1076 = vmax.f32 %v1059, 0.0
      %v1077 = vmax.f32 %v1064, 0.0
      %v1078 = vadd.s32 %v542, 1
      %v1079 = vadd.s32 %v543, 1
      %v1080 = vadd.s32 %v544, 1
      %v1081 = vadd.s32 %v545, 1
      %v1082 = vadd.s32 %v546, 1
      %v1083 = vadd.s32 %v547, 1
      %v1084 = vadd.s32 %v548, 1
      %v1085 = vadd.s32 %v549, 1
      %v1086 = vadd.s32 %v550, 1
      %vm1087 = vcmp.ge.s32.totalorder %v1078, 1
      %vm1088 = vcmp.ge.s32.totalorder %v1079, 1
      %vm1089 = vcmp.ge.s32.totalorder %v1080, 1
      %vm1090 = vcmp.ge.s32.totalorder %v1081, 1
      %vm1091 = vcmp.ge.s32.totalorder %v1082, 1
      %vm1092 = vcmp.ge.s32.totalorder %v1083, 1
      %vm1093 = vcmp.ge.s32.totalorder %v1084, 1
      %vm1094 = vcmp.ge.s32.totalorder %v1085, 1
      %vm1095 = vcmp.ge.s32.totalorder %v1086, 1
      %vm1096 = vcmp.le.s32.totalorder %v1078, 16
      %vm1097 = vcmp.le.s32.totalorder %v1079, 16
      %vm1098 = vcmp.le.s32.totalorder %v1080, 16
      %vm1099 = vcmp.le.s32.totalorder %v1081, 16
      %vm1100 = vcmp.le.s32.totalorder %v1082, 16
      %vm1101 = vcmp.le.s32.totalorder %v1083, 16
      %vm1102 = vcmp.le.s32.totalorder %v1084, 16
      %vm1103 = vcmp.le.s32.totalorder %v1085, 16
      %vm1104 = vcmp.le.s32.totalorder %v1086, 16
      %vm1105 = vmand %vm1087, %vm1096
      %vm1106 = vmand %vm1088, %vm1097
      %vm1107 = vmand %vm1089, %vm1098
      %vm1108 = vmand %vm1090, %vm1099
      %vm1109 = vmand %vm1091, %vm1100
      %vm1110 = vmand %vm1092, %vm1101
      %vm1111 = vmand %vm1093, %vm1102
      %vm1112 = vmand %vm1094, %vm1103
      %vm1113 = vmand %vm1095, %vm1104
      %vm1114 = vmand %vm1105, %vm587
      %vm1115 = vmand %vm1106, %vm588
      %vm1116 = vmand %vm1107, %vm589
      %vm1117 = vmand %vm1108, %vm590
      %vm1118 = vmand %vm1109, %vm591
      %vm1119 = vmand %vm1110, %vm592
      %vm1120 = vmand %vm1111, %vm593
      %vm1121 = vmand %vm1112, %vm594
      %vm1122 = vmand %vm1113, %vm595
      %vm1123 = vmand %vm1114, %vm605
      %vm1124 = vmand %vm1115, %vm606
      %vm1125 = vmand %vm1116, %vm607
      %vm1126 = vmand %vm1117, %vm608
      %vm1127 = vmand %vm1118, %vm609
      %vm1128 = vmand %vm1119, %vm610
      %vm1129 = vmand %vm1120, %vm611
      %vm1130 = vmand %vm1121, %vm612
      %vm1131 = vmand %vm1122, %vm613
      %v1132 = vsel %vm1123, 1, 0
      %v1133 = vsel %vm1124, 1, 0
      %v1134 = vsel %vm1125, 1, 0
      %v1135 = vsel %vm1126, 1, 0
      %v1136 = vsel %vm1127, 1, 0
      %v1137 = vsel %vm1128, 1, 0
      %v1138 = vsel %vm1129, 1, 0
      %v1139 = vsel %vm1130, 1, 0
      %v1140 = vsel %vm1131, 1, 0
      %vm1141 = vcmp.eq.s32.totalorder %v1132, 1
      %vm1142 = vcmp.eq.s32.totalorder %v1133, 1
      %vm1143 = vcmp.eq.s32.totalorder %v1134, 1
      %vm1144 = vcmp.eq.s32.totalorder %v1135, 1
      %vm1145 = vcmp.eq.s32.totalorder %v1136, 1
      %vm1146 = vcmp.eq.s32.totalorder %v1137, 1
      %vm1147 = vcmp.eq.s32.totalorder %v1138, 1
      %vm1148 = vcmp.eq.s32.totalorder %v1139, 1
      %vm1149 = vcmp.eq.s32.totalorder %v1140, 1
      %v1150 = vsel %vm1141, %v1069, 0.0
      %v1151 = vsel %vm1142, %v1070, 0.0
      %v1152 = vsel %vm1143, %v1071, 0.0
      %v1153 = vsel %vm1144, %v1072, 0.0
      %v1154 = vsel %vm1145, %v1073, 0.0
      %v1155 = vsel %vm1146, %v1074, 0.0
      %v1156 = vsel %vm1147, %v1075, 0.0
      %v1157 = vsel %vm1148, %v1076, 0.0
      %v1158 = vsel %vm1149, %v1077, 0.0
      %v1159 = vpack.c.bf16 %v1151, %v1150
      %v1160 = vpack.c.bf16 %v1153, %v1152
      %v1161 = vpack.c.bf16 %v1155, %v1154
      %v1162 = vpack.c.bf16 %v1157, %v1156
      %v1163 = vpack.c.bf16 %v1158, %v1158
      %v1169 = vunpack.c.l.b16 %v1159
      %v1170 = vunpack.c.h.b16 %v1159
      %v1171 = vunpack.c.l.b16 %v1160
      %v1172 = vunpack.c.h.b16 %v1160
      %v1173 = vunpack.c.l.b16 %v1161
      %v1174 = vunpack.c.h.b16 %v1161
      %v1175 = vunpack.c.l.b16 %v1162
      %v1176 = vunpack.c.h.b16 %v1162
      %v1177 = vunpack.c.l.b16 %v1163
      %v1178 = vpack.c.b16 %v1169, %v1169
      %v1179 = vpack.c.b16 %v1170, %v1170
      %v1180 = vpack.c.b16 %v1171, %v1171
      %v1181 = vpack.c.b16 %v1172, %v1172
      %v1182 = vpack.c.b16 %v1173, %v1173
      %v1183 = vpack.c.b16 %v1174, %v1174
      %v1184 = vpack.c.b16 %v1175, %v1175
      %v1185 = vpack.c.b16 %v1176, %v1176
      %v1186 = vpack.c.b16 %v1177, %v1177
      %s1196 = scalar_lea.vmem [#allocation2], 72
      %1197 = vst.msk [vmem:[%s1196] sm:$0xf] %vm687, %v1178
      %1198 = vst.msk [vmem:[%s1196 + $0x4] sm:$0xf] %vm687, %v1179
      %1199 = vst.msk [vmem:[%s1196 + $0x8] sm:$0xf] %vm687, %v1180
      %1200 = vst.msk [vmem:[%s1196 + $0xc] sm:$0xf] %vm687, %v1181
      %1201 = vst.msk [vmem:[%s1196 + $0x10] sm:$0xf] %vm687, %v1182
      %1202 = vst.msk [vmem:[%s1196 + $0x14] sm:$0xf] %vm687, %v1183
      %1203 = vst.msk [vmem:[%s1196 + $0x18] sm:$0xf] %vm687, %v1184
      %1204 = vst.msk [vmem:[%s1196 + $0x1c] sm:$0xf] %vm687, %v1185
      %1205 = vst.msk [vmem:[%s1196 + $0x20] sm:$0xf] %vm687, %v1186
      %s1206 = sadd.s32 %s399, 63
      %s1207 = smul.addr %s1206, 4
      %s1208 = scalar_lea.vmem %s345, %s1207
      %v1209 = vld [vmem:[%s1208] sm:$0xf]
      %v1210 = vld [vmem:[%s1208 + $0x4] sm:$0xf]
      %v1211 = vld [vmem:[%s1208 + $0x8] sm:$0xf]
      %v1212 = vld [vmem:[%s1208 + $0xc] sm:$0xf]
      %v1213 = vld [vmem:[%s1208 + $0x10] sm:$0xf]
      %v1214 = vld [vmem:[%s1208 + $0x14] sm:$0xf]
      %v1215 = vld [vmem:[%s1208 + $0x18] sm:$0xf]
      %v1216 = vld [vmem:[%s1208 + $0x1c] sm:$0xf]
      %v1217 = vld [vmem:[%s1208 + $0x20] sm:$0xf]
      %v1227 = vunpack.c.l.b16 %v1209
      %v1228 = vunpack.c.l.b16 %v1210
      %v1229 = vunpack.c.l.b16 %v1211
      %v1230 = vunpack.c.l.b16 %v1212
      %v1231 = vunpack.c.l.b16 %v1213
      %v1232 = vunpack.c.l.b16 %v1214
      %v1233 = vunpack.c.l.b16 %v1215
      %v1234 = vunpack.c.l.b16 %v1216
      %v1235 = vunpack.c.l.b16 %v1217
      %v1236 = vpack.c.b16 %v1228, %v1227
      %v1237 = vpack.c.b16 %v1230, %v1229
      %v1238 = vpack.c.b16 %v1232, %v1231
      %v1239 = vpack.c.b16 %v1234, %v1233
      %v1240 = vpack.c.b16 %v1235, %v1235
      %v1242 = vsel %vm441, %v1236, 0
      %v1245 = vsel %vm441, %v1237, 0
      %v1248 = vsel %vm441, %v1238, 0
      %v1251 = vsel %vm441, %v1239, 0
      %v1254 = vsel %vm441, %v1240, 0
      %1256 = vmatprep.subr.bf16.mxu0 0
      %1257 = vmatpush1.bf16.msra.mxu0 %v459
      %1258 = vmatprep.subr.bf16.mxu0 0
      %1259 = vmatpush1.bf16.msra.mxu0 0
      %1260 = vmatprep.subr.bf16.mxu0 0
      %1261 = vmatpush1.bf16.msra.mxu0 0
      %1262 = vmatprep.subr.bf16.mxu0 0
      %1263 = vmatpush1.bf16.msra.mxu0 0
      %1264 = vmatprep.subr.bf16.mxu0 0
      %1265 = vmatpush1.bf16.msra.mxu0 0
      %1266 = vmatprep.subr.bf16.mxu0 0
      %1267 = vmatpush1.bf16.msra.mxu0 0
      %1268 = vmatprep.subr.bf16.mxu0 0
      %1269 = vmatpush1.bf16.msra.mxu0 0
      %1270 = vmatprep.subr.bf16.mxu0 0
      %1271 = vmatpush1.bf16.msra.mxu0 0
      %1272 = vmatprep.subr.bf16.mxu0 0
      %1273 = vmatpush1.bf16.msra.mxu0 0
      %1274 = vmatprep.subr.bf16.mxu0 0
      %1275 = vmatpush1.bf16.msra.mxu0 0
      %1276 = vmatprep.subr.bf16.mxu0 0
      %1277 = vmatpush1.bf16.msra.mxu0 0
      %1278 = vmatprep.subr.bf16.mxu0 0
      %1279 = vmatpush1.bf16.msra.mxu0 0
      %1280 = vmatprep.subr.bf16.mxu0 0
      %1281 = vmatpush1.bf16.msra.mxu0 0
      %1282 = vmatprep.subr.bf16.mxu0 0
      %1283 = vmatpush1.bf16.msra.mxu0 0
      %1284 = vmatprep.subr.bf16.mxu0 0
      %1285 = vmatpush1.bf16.msra.mxu0 0
      %1286 = vmatprep.subr.bf16.mxu0 0
      %1287 = vmatpush1.bf16.msra.mxu0 0
      %1288 = vmatprep.mubr.bf16.mxu0 0
      %1289 = vmatmul.mubr.bf16.gmra.mrb[0].mxu0 %v1242
      %v1290 = vpop.f32.mrb[0].mxu0
      %v1291 = vadd.f32 %v416, %v1290
      %v1292 = vpop.f32.mrb[0].mxu0
      %v1293 = vpop.f32.mrb[0].mxu0
      %v1294 = vadd.f32 %v416, %v1293
      %v1295 = vpop.f32.mrb[0].mxu0
      %1296 = vmatprep.mubr.bf16.mxu0 0
      %1297 = vmatmul.mubr.bf16.gmra.mrb[0].mxu0 %v1245
      %v1298 = vpop.f32.mrb[0].mxu0
      %v1299 = vadd.f32 %v416, %v1298
      %v1300 = vpop.f32.mrb[0].mxu0
      %v1301 = vpop.f32.mrb[0].mxu0
      %v1302 = vadd.f32 %v416, %v1301
      %v1303 = vpop.f32.mrb[0].mxu0
      %1304 = vmatprep.mubr.bf16.mxu0 0
      %1305 = vmatmul.mubr.bf16.gmra.mrb[0].mxu0 %v1248
      %v1306 = vpop.f32.mrb[0].mxu0
      %v1307 = vadd.f32 %v416, %v1306
      %v1308 = vpop.f32.mrb[0].mxu0
      %v1309 = vpop.f32.mrb[0].mxu0
      %v1310 = vadd.f32 %v416, %v1309
      %v1311 = vpop.f32.mrb[0].mxu0
      %1312 = vmatprep.mubr.bf16.mxu0 0
      %1313 = vmatmul.mubr.bf16.gmra.mrb[0].mxu0 %v1251
      %v1314 = vpop.f32.mrb[0].mxu0
      %v1315 = vadd.f32 %v416, %v1314
      %v1316 = vpop.f32.mrb[0].mxu0
      %v1317 = vpop.f32.mrb[0].mxu0
      %v1318 = vadd.f32 %v416, %v1317
      %v1319 = vpop.f32.mrb[0].mxu0
      %1320 = vmatprep.mubr.bf16.mxu0 0
      %1321 = vmatmul.mubr.bf16.gmra.mrb[0].mxu0 %v1254
      %v1322 = vpop.f32.mrb[0].mxu0
      %v1323 = vadd.f32 %v416, %v1322
      %v1324 = vpop.f32.mrb[0].mxu0
      %v1325 = vpop.f32.mrb[0].mxu0
      %v1326 = vpop.f32.mrb[0].mxu0
      %1327 = vdwg.mxu0
      %v1328 = vmax.f32 %v1291, 0.0
      %v1329 = vmax.f32 %v1294, 0.0
      %v1330 = vmax.f32 %v1299, 0.0
      %v1331 = vmax.f32 %v1302, 0.0
      %v1332 = vmax.f32 %v1307, 0.0
      %v1333 = vmax.f32 %v1310, 0.0
      %v1334 = vmax.f32 %v1315, 0.0
      %v1335 = vmax.f32 %v1318, 0.0
      %v1336 = vmax.f32 %v1323, 0.0
      %vm1337 = vmand %vm1105, %vm837
      %vm1338 = vmand %vm1106, %vm838
      %vm1339 = vmand %vm1107, %vm839
      %vm1340 = vmand %vm1108, %vm840
      %vm1341 = vmand %vm1109, %vm841
      %vm1342 = vmand %vm1110, %vm842
      %vm1343 = vmand %vm1111, %vm843
      %vm1344 = vmand %vm1112, %vm844
      %vm1345 = vmand %vm1113, %vm845
      %vm1346 = vmand %vm1337, %vm855
      %vm1347 = vmand %vm1338, %vm856
      %vm1348 = vmand %vm1339, %vm857
      %vm1349 = vmand %vm1340, %vm858
      %vm1350 = vmand %vm1341, %vm859
      %vm1351 = vmand %vm1342, %vm860
      %vm1352 = vmand %vm1343, %vm861
      %vm1353 = vmand %vm1344, %vm862
      %vm1354 = vmand %vm1345, %vm863
      %v1355 = vsel %vm1346, 1, 0
      %v1356 = vsel %vm1347, 1, 0
      %v1357 = vsel %vm1348, 1, 0
      %v1358 = vsel %vm1349, 1, 0
      %v1359 = vsel %vm1350, 1, 0
      %v1360 = vsel %vm1351, 1, 0
      %v1361 = vsel %vm1352, 1, 0
      %v1362 = vsel %vm1353, 1, 0
      %v1363 = vsel %vm1354, 1, 0
      %vm1364 = vcmp.eq.s32.totalorder %v1355, 1
      %vm1365 = vcmp.eq.s32.totalorder %v1356, 1
      %vm1366 = vcmp.eq.s32.totalorder %v1357, 1
      %vm1367 = vcmp.eq.s32.totalorder %v1358, 1
      %vm1368 = vcmp.eq.s32.totalorder %v1359, 1
      %vm1369 = vcmp.eq.s32.totalorder %v1360, 1
      %vm1370 = vcmp.eq.s32.totalorder %v1361, 1
      %vm1371 = vcmp.eq.s32.totalorder %v1362, 1
      %vm1372 = vcmp.eq.s32.totalorder %v1363, 1
      %v1373 = vsel %vm1364, %v1328, 0.0
      %v1374 = vsel %vm1365, %v1329, 0.0
      %v1375 = vsel %vm1366, %v1330, 0.0
      %v1376 = vsel %vm1367, %v1331, 0.0
      %v1377 = vsel %vm1368, %v1332, 0.0
      %v1378 = vsel %vm1369, %v1333, 0.0
      %v1379 = vsel %vm1370, %v1334, 0.0
      %v1380 = vsel %vm1371, %v1335, 0.0
      %v1381 = vsel %vm1372, %v1336, 0.0
      %v1382 = vpack.c.bf16 %v1374, %v1373
      %v1383 = vpack.c.bf16 %v1376, %v1375
      %v1384 = vpack.c.bf16 %v1378, %v1377
      %v1385 = vpack.c.bf16 %v1380, %v1379
      %v1386 = vpack.c.bf16 %v1381, %v1381
      %v1392 = vunpack.c.l.b16 %v1382
      %v1393 = vunpack.c.h.b16 %v1382
      %v1394 = vunpack.c.l.b16 %v1383
      %v1395 = vunpack.c.h.b16 %v1383
      %v1396 = vunpack.c.l.b16 %v1384
      %v1397 = vunpack.c.h.b16 %v1384
      %v1398 = vunpack.c.l.b16 %v1385
      %v1399 = vunpack.c.h.b16 %v1385
      %v1400 = vunpack.c.l.b16 %v1386
      %v1401 = vpack.c.b16 %v1392, %v1392
      %v1402 = vpack.c.b16 %v1393, %v1393
      %v1403 = vpack.c.b16 %v1394, %v1394
      %v1404 = vpack.c.b16 %v1395, %v1395
      %v1405 = vpack.c.b16 %v1396, %v1396
      %v1406 = vpack.c.b16 %v1397, %v1397
      %v1407 = vpack.c.b16 %v1398, %v1398
      %v1408 = vpack.c.b16 %v1399, %v1399
      %v1409 = vpack.c.b16 %v1400, %v1400
      %s1419 = scalar_lea.vmem [#allocation2], 108
      %1420 = vst.msk [vmem:[%s1419] sm:$0xf] %vm687, %v1401
      %1421 = vst.msk [vmem:[%s1419 + $0x4] sm:$0xf] %vm687, %v1402
      %1422 = vst.msk [vmem:[%s1419 + $0x8] sm:$0xf] %vm687, %v1403
      %1423 = vst.msk [vmem:[%s1419 + $0xc] sm:$0xf] %vm687, %v1404
      %1424 = vst.msk [vmem:[%s1419 + $0x10] sm:$0xf] %vm687, %v1405
      %1425 = vst.msk [vmem:[%s1419 + $0x14] sm:$0xf] %vm687, %v1406
      %1426 = vst.msk [vmem:[%s1419 + $0x18] sm:$0xf] %vm687, %v1407
      %1427 = vst.msk [vmem:[%s1419 + $0x1c] sm:$0xf] %vm687, %v1408
      %1428 = vst.msk [vmem:[%s1419 + $0x20] sm:$0xf] %vm687, %v1409
      %v1429 = vld [vmem:[#allocation2] sm:$0xf]
      %v1430 = vld [vmem:[#allocation2 + $0x4] sm:$0xf]
      %v1431 = vld [vmem:[#allocation2 + $0x8] sm:$0xf]
      %v1432 = vld [vmem:[#allocation2 + $0xc] sm:$0xf]
      %v1433 = vld [vmem:[#allocation2 + $0x10] sm:$0xf]
      %v1434 = vld [vmem:[#allocation2 + $0x14] sm:$0xf]
      %v1435 = vld [vmem:[%s3] sm:$0x3]
      %v1436 = vld [vmem:[%s937] sm:$0xf]
      %v1437 = vld [vmem:[%s937 + $0x4] sm:$0xf]
      %v1438 = vld [vmem:[%s937 + $0x8] sm:$0xf]
      %v1439 = vld [vmem:[%s937 + $0xc] sm:$0xf]
      %v1440 = vld [vmem:[%s937 + $0x10] sm:$0xf]
      %v1441 = vld [vmem:[%s937 + $0x14] sm:$0xf]
      %s1442 = scalar_lea.vmem %s3, 2
      %v1443 = vld [vmem:[%s1442] sm:$0x3]
      %v1450 = vunpack.c.l.b16 %v1436
      %v1451 = vunpack.c.l.b16 %v1437
      %v1452 = vunpack.c.l.b16 %v1438
      %v1453 = vunpack.c.l.b16 %v1439
      %v1454 = vunpack.c.l.b16 %v1440
      %v1455 = vunpack.c.l.b16 %v1441
      %v1456 = vpack.c.b16 %v1451, %v1450
      %v1457 = vpack.c.b16 %v1453, %v1452
      %v1458 = vpack.c.b16 %v1455, %v1454
      %vm1459 = vcmask 31744
      %v1461 = vsel %vm1459, %v1456, 0
      %v1464 = vsel %vm1459, %v1457, 0
      %v1467 = vsel %vm1459, %v1458, 0
      %vm1469 = vcmask 1041408
      %v1471 = vsel %vm1469, %v1443, 0
      %1473 = vmatprep.subr.bf16.mxu0 0
      %1474 = vmatpush1.bf16.msra.mxu0 %v1471
      %1475 = vmatprep.subr.bf16.mxu0 0
      %1476 = vmatpush1.bf16.msra.mxu0 0
      %1477 = vmatprep.subr.bf16.mxu0 0
      %1478 = vmatpush1.bf16.msra.mxu0 0
      %1479 = vmatprep.subr.bf16.mxu0 0
      %1480 = vmatpush1.bf16.msra.mxu0 0
      %1481 = vmatprep.subr.bf16.mxu0 0
      %1482 = vmatpush1.bf16.msra.mxu0 0
      %1483 = vmatprep.subr.bf16.mxu0 0
      %1484 = vmatpush1.bf16.msra.mxu0 0
      %1485 = vmatprep.subr.bf16.mxu0 0
      %1486 = vmatpush1.bf16.msra.mxu0 0
      %1487 = vmatprep.subr.bf16.mxu0 0
      %1488 = vmatpush1.bf16.msra.mxu0 0
      %1489 = vmatprep.subr.bf16.mxu0 0
      %1490 = vmatpush1.bf16.msra.mxu0 0
      %1491 = vmatprep.subr.bf16.mxu0 0
      %1492 = vmatpush1.bf16.msra.mxu0 0
      %1493 = vmatprep.subr.bf16.mxu0 0
      %1494 = vmatpush1.bf16.msra.mxu0 0
      %1495 = vmatprep.subr.bf16.mxu0 0
      %1496 = vmatpush1.bf16.msra.mxu0 0
      %1497 = vmatprep.subr.bf16.mxu0 0
      %1498 = vmatpush1.bf16.msra.mxu0 0
      %1499 = vmatprep.subr.bf16.mxu0 0
      %1500 = vmatpush1.bf16.msra.mxu0 0
      %1501 = vmatprep.subr.bf16.mxu0 0
      %1502 = vmatpush1.bf16.msra.mxu0 0
      %1503 = vmatprep.subr.bf16.mxu0 0
      %1504 = vmatpush1.bf16.msra.mxu0 0
      %1505 = vmatprep.mubr.bf16.mxu0 0
      %1506 = vmatmul.mubr.bf16.gmra.mrb[0].mxu0 %v1461
      %v1507 = vpop.f32.mrb[0].mxu0
      %v1508 = vadd.f32 0.0, %v1507
      %v1509 = vpop.f32.mrb[0].mxu0
      %v1510 = vpop.f32.mrb[0].mxu0
      %v1511 = vadd.f32 0.0, %v1510
      %v1512 = vpop.f32.mrb[0].mxu0
      %1513 = vmatprep.mubr.bf16.mxu0 0
      %1514 = vmatmul.mubr.bf16.gmra.mrb[0].mxu0 %v1464
      %v1515 = vpop.f32.mrb[0].mxu0
      %v1516 = vadd.f32 0.0, %v1515
      %v1517 = vpop.f32.mrb[0].mxu0
      %v1518 = vpop.f32.mrb[0].mxu0
      %v1519 = vadd.f32 0.0, %v1518
      %v1520 = vpop.f32.mrb[0].mxu0
      %1521 = vmatprep.mubr.bf16.mxu0 0
      %1522 = vmatmul.mubr.bf16.gmra.mrb[0].mxu0 %v1467
      %v1523 = vpop.f32.mrb[0].mxu0
      %v1524 = vadd.f32 0.0, %v1523
      %v1525 = vpop.f32.mrb[0].mxu0
      %v1526 = vpop.f32.mrb[0].mxu0
      %v1527 = vadd.f32 0.0, %v1526
      %v1528 = vpop.f32.mrb[0].mxu0
      %1529 = vdwg.mxu0
      %v1536 = vunpack.c.l.b16 %v1429
      %v1537 = vunpack.c.l.b16 %v1430
      %v1538 = vunpack.c.l.b16 %v1431
      %v1539 = vunpack.c.l.b16 %v1432
      %v1540 = vunpack.c.l.b16 %v1433
      %v1541 = vunpack.c.l.b16 %v1434
      %v1542 = vpack.c.b16 %v1537, %v1536
      %v1543 = vpack.c.b16 %v1539, %v1538
      %v1544 = vpack.c.b16 %v1541, %v1540
      %v1546 = vsel %vm1459, %v1542, 0
      %v1549 = vsel %vm1459, %v1543, 0
      %v1552 = vsel %vm1459, %v1544, 0
      %v1555 = vsel %vm1469, %v1435, 0
      %1557 = vmatprep.subr.bf16.mxu0 0
      %1558 = vmatpush1.bf16.msra.mxu0 %v1555
      %1559 = vmatprep.subr.bf16.mxu0 0
      %1560 = vmatpush1.bf16.msra.mxu0 0
      %1561 = vmatprep.subr.bf16.mxu0 0
      %1562 = vmatpush1.bf16.msra.mxu0 0
      %1563 = vmatprep.subr.bf16.mxu0 0
      %1564 = vmatpush1.bf16.msra.mxu0 0
      %1565 = vmatprep.subr.bf16.mxu0 0
      %1566 = vmatpush1.bf16.msra.mxu0 0
      %1567 = vmatprep.subr.bf16.mxu0 0
      %1568 = vmatpush1.bf16.msra.mxu0 0
      %1569 = vmatprep.subr.bf16.mxu0 0
      %1570 = vmatpush1.bf16.msra.mxu0 0
      %1571 = vmatprep.subr.bf16.mxu0 0
      %1572 = vmatpush1.bf16.msra.mxu0 0
      %1573 = vmatprep.subr.bf16.mxu0 0
      %1574 = vmatpush1.bf16.msra.mxu0 0
      %1575 = vmatprep.subr.bf16.mxu0 0
      %1576 = vmatpush1.bf16.msra.mxu0 0
      %1577 = vmatprep.subr.bf16.mxu0 0
      %1578 = vmatpush1.bf16.msra.mxu0 0
      %1579 = vmatprep.subr.bf16.mxu0 0
      %1580 = vmatpush1.bf16.msra.mxu0 0
      %1581 = vmatprep.subr.bf16.mxu0 0
      %1582 = vmatpush1.bf16.msra.mxu0 0
      %1583 = vmatprep.subr.bf16.mxu0 0
      %1584 = vmatpush1.bf16.msra.mxu0 0
      %1585 = vmatprep.subr.bf16.mxu0 0
      %1586 = vmatpush1.bf16.msra.mxu0 0
      %1587 = vmatprep.subr.bf16.mxu0 0
      %1588 = vmatpush1.bf16.msra.mxu0 0
      %1589 = vmatprep.mubr.bf16.mxu0 0
      %1590 = vmatmul.mubr.bf16.gmra.mrb[0].mxu0 %v1546
      %v1591 = vpop.f32.mrb[0].mxu0
      %v1592 = vadd.f32 %v1508, %v1591
      %v1593 = vpop.f32.mrb[0].mxu0
      %v1594 = vpop.f32.mrb[0].mxu0
      %v1595 = vadd.f32 %v1511, %v1594
      %v1596 = vpop.f32.mrb[0].mxu0
      %1597 = vmatprep.mubr.bf16.mxu0 0
      %1598 = vmatmul.mubr.bf16.gmra.mrb[0].mxu0 %v1549
      %v1599 = vpop.f32.mrb[0].mxu0
      %v1600 = vadd.f32 %v1516, %v1599
      %v1601 = vpop.f32.mrb[0].mxu0
      %v1602 = vpop.f32.mrb[0].mxu0
      %v1603 = vadd.f32 %v1519, %v1602
      %v1604 = vpop.f32.mrb[0].mxu0
      %1605 = vmatprep.mubr.bf16.mxu0 0
      %1606 = vmatmul.mubr.bf16.gmra.mrb[0].mxu0 %v1552
      %v1607 = vpop.f32.mrb[0].mxu0
      %v1608 = vadd.f32 %v1524, %v1607
      %v1609 = vpop.f32.mrb[0].mxu0
      %v1610 = vpop.f32.mrb[0].mxu0
      %v1611 = vadd.f32 %v1527, %v1610
      %v1612 = vpop.f32.mrb[0].mxu0
      %1613 = vdwg.mxu0
      %v1614 = vld [vmem:[#allocation2] sm:$0xf]
      %v1615 = vld [vmem:[#allocation2 + $0x4] sm:$0xf]
      %v1616 = vld [vmem:[#allocation2 + $0x8] sm:$0xf]
      %v1617 = vld [vmem:[#allocation2 + $0xc] sm:$0xf]
      %v1618 = vld [vmem:[#allocation2 + $0x10] sm:$0xf]
      %v1619 = vld [vmem:[#allocation2 + $0x14] sm:$0xf]
      %v1620 = vld [vmem:[#allocation2 + $0x18] sm:$0x1]
      %s1621 = scalar_lea.vmem %s3, 4
      %v1622 = vld [vmem:[%s1621] sm:$0x3]
      %v1630 = vunpack.c.l.b16 %v1614
      %v1631 = vunpack.c.l.b16 %v1615
      %v1632 = vunpack.c.l.b16 %v1616
      %v1633 = vunpack.c.l.b16 %v1617
      %v1634 = vunpack.c.l.b16 %v1618
      %v1635 = vunpack.c.l.b16 %v1619
      %v1636 = vunpack.c.l.b16 %v1620
      %v1637 = vpack.c.b16 %v1631, %v1630
      %v1638 = vpack.c.b16 %v1633, %v1632
      %v1639 = vpack.c.b16 %v1635, %v1634
      %v1640 = vpack.c.b16 %v1636, %v1636
      %vm1641 = vsmask.f32 7424
      %v1643 = vshrl.u32 %v1637, 16
      %v1645 = vshll.u32 %v1637, 16
      %v1647 = vrot.slane %v1645, 1
      %v1648 = vor.u32 %v1643, %v1647
      %v1650 = vshll.u32 %v1638, 16
      %v1652 = vrot.slane %v1650, 1
      %v1653 = vsel %vm1641, %v1648, %v1652
      %v1654 = vshrl.u32 %v1638, 16
      %v1656 = vor.u32 %v1654, %v1652
      %v1658 = vshll.u32 %v1639, 16
      %v1660 = vrot.slane %v1658, 1
      %v1661 = vsel %vm1641, %v1656, %v1660
      %v1662 = vshrl.u32 %v1639, 16
      %v1664 = vor.u32 %v1662, %v1660
      %v1666 = vshll.u32 %v1640, 16
      %v1668 = vrot.slane %v1666, 1
      %v1669 = vsel %vm1641, %v1664, %v1668
      %v1671 = vsel %vm1459, %v1653, 0
      %v1674 = vsel %vm1459, %v1661, 0
      %v1677 = vsel %vm1459, %v1669, 0
      %v1680 = vsel %vm1469, %v1622, 0
      %1682 = vmatprep.subr.bf16.mxu0 0
      %1683 = vmatpush1.bf16.msra.mxu0 %v1680
      %1684 = vmatprep.subr.bf16.mxu0 0
      %1685 = vmatpush1.bf16.msra.mxu0 0
      %1686 = vmatprep.subr.bf16.mxu0 0
      %1687 = vmatpush1.bf16.msra.mxu0 0
      %1688 = vmatprep.subr.bf16.mxu0 0
      %1689 = vmatpush1.bf16.msra.mxu0 0
      %1690 = vmatprep.subr.bf16.mxu0 0
      %1691 = vmatpush1.bf16.msra.mxu0 0
      %1692 = vmatprep.subr.bf16.mxu0 0
      %1693 = vmatpush1.bf16.msra.mxu0 0
      %1694 = vmatprep.subr.bf16.mxu0 0
      %1695 = vmatpush1.bf16.msra.mxu0 0
      %1696 = vmatprep.subr.bf16.mxu0 0
      %1697 = vmatpush1.bf16.msra.mxu0 0
      %1698 = vmatprep.subr.bf16.mxu0 0
      %1699 = vmatpush1.bf16.msra.mxu0 0
      %1700 = vmatprep.subr.bf16.mxu0 0
      %1701 = vmatpush1.bf16.msra.mxu0 0
      %1702 = vmatprep.subr.bf16.mxu0 0
      %1703 = vmatpush1.bf16.msra.mxu0 0
      %1704 = vmatprep.subr.bf16.mxu0 0
      %1705 = vmatpush1.bf16.msra.mxu0 0
      %1706 = vmatprep.subr.bf16.mxu0 0
      %1707 = vmatpush1.bf16.msra.mxu0 0
      %1708 = vmatprep.subr.bf16.mxu0 0
      %1709 = vmatpush1.bf16.msra.mxu0 0
      %1710 = vmatprep.subr.bf16.mxu0 0
      %1711 = vmatpush1.bf16.msra.mxu0 0
      %1712 = vmatprep.subr.bf16.mxu0 0
      %1713 = vmatpush1.bf16.msra.mxu0 0
      %1714 = vmatprep.mubr.bf16.mxu0 0
      %1715 = vmatmul.mubr.bf16.gmra.mrb[0].mxu0 %v1671
      %v1716 = vpop.f32.mrb[0].mxu0
      %v1717 = vadd.f32 0.0, %v1716
      %v1718 = vpop.f32.mrb[0].mxu0
      %v1719 = vpop.f32.mrb[0].mxu0
      %v1720 = vadd.f32 0.0, %v1719
      %v1721 = vpop.f32.mrb[0].mxu0
      %1722 = vmatprep.mubr.bf16.mxu0 0
      %1723 = vmatmul.mubr.bf16.gmra.mrb[0].mxu0 %v1674
      %v1724 = vpop.f32.mrb[0].mxu0
      %v1725 = vadd.f32 0.0, %v1724
      %v1726 = vpop.f32.mrb[0].mxu0
      %v1727 = vpop.f32.mrb[0].mxu0
      %v1728 = vadd.f32 0.0, %v1727
      %v1729 = vpop.f32.mrb[0].mxu0
      %1730 = vmatprep.mubr.bf16.mxu0 0
      %1731 = vmatmul.mubr.bf16.gmra.mrb[0].mxu0 %v1677
      %v1732 = vpop.f32.mrb[0].mxu0
      %v1733 = vadd.f32 0.0, %v1732
      %v1734 = vpop.f32.mrb[0].mxu0
      %v1735 = vpop.f32.mrb[0].mxu0
      %v1736 = vadd.f32 0.0, %v1735
      %v1737 = vpop.f32.mrb[0].mxu0
      %1738 = vdwg.mxu0
      %v1739 = vadd.f32 %v1592, %v1717
      %v1740 = vadd.f32 %v1595, %v1720
      %v1741 = vadd.f32 %v1600, %v1725
      %v1742 = vadd.f32 %v1603, %v1728
      %v1743 = vadd.f32 %v1608, %v1733
      %v1744 = vadd.f32 %v1611, %v1736
      %v1745 = vld [vmem:[%s1196] sm:$0xf]
      %v1746 = vld [vmem:[%s1196 + $0x4] sm:$0xf]
      %v1747 = vld [vmem:[%s1196 + $0x8] sm:$0xf]
      %v1748 = vld [vmem:[%s1196 + $0xc] sm:$0xf]
      %v1749 = vld [vmem:[%s1196 + $0x10] sm:$0xf]
      %v1750 = vld [vmem:[%s1196 + $0x14] sm:$0xf]
      %s1751 = scalar_lea.vmem %s3, 6
      %v1752 = vld [vmem:[%s1751] sm:$0x3]
      %v1759 = vunpack.c.l.b16 %v1745
      %v1760 = vunpack.c.l.b16 %v1746
      %v1761 = vunpack.c.l.b16 %v1747
      %v1762 = vunpack.c.l.b16 %v1748
      %v1763 = vunpack.c.l.b16 %v1749
      %v1764 = vunpack.c.l.b16 %v1750
      %v1765 = vpack.c.b16 %v1760, %v1759
      %v1766 = vpack.c.b16 %v1762, %v1761
      %v1767 = vpack.c.b16 %v1764, %v1763
      %v1769 = vsel %vm1459, %v1765, 0
      %v1772 = vsel %vm1459, %v1766, 0
      %v1775 = vsel %vm1459, %v1767, 0
      %v1778 = vsel %vm1469, %v1752, 0
      %1780 = vmatprep.subr.bf16.mxu0 0
      %1781 = vmatpush1.bf16.msra.mxu0 %v1778
      %1782 = vmatprep.subr.bf16.mxu0 0
      %1783 = vmatpush1.bf16.msra.mxu0 0
      %1784 = vmatprep.subr.bf16.mxu0 0
      %1785 = vmatpush1.bf16.msra.mxu0 0
      %1786 = vmatprep.subr.bf16.mxu0 0
      %1787 = vmatpush1.bf16.msra.mxu0 0
      %1788 = vmatprep.subr.bf16.mxu0 0
      %1789 = vmatpush1.bf16.msra.mxu0 0
      %1790 = vmatprep.subr.bf16.mxu0 0
      %1791 = vmatpush1.bf16.msra.mxu0 0
      %1792 = vmatprep.subr.bf16.mxu0 0
      %1793 = vmatpush1.bf16.msra.mxu0 0
      %1794 = vmatprep.subr.bf16.mxu0 0
      %1795 = vmatpush1.bf16.msra.mxu0 0
      %1796 = vmatprep.subr.bf16.mxu0 0
      %1797 = vmatpush1.bf16.msra.mxu0 0
      %1798 = vmatprep.subr.bf16.mxu0 0
      %1799 = vmatpush1.bf16.msra.mxu0 0
      %1800 = vmatprep.subr.bf16.mxu0 0
      %1801 = vmatpush1.bf16.msra.mxu0 0
      %1802 = vmatprep.subr.bf16.mxu0 0
      %1803 = vmatpush1.bf16.msra.mxu0 0
      %1804 = vmatprep.subr.bf16.mxu0 0
      %1805 = vmatpush1.bf16.msra.mxu0 0
      %1806 = vmatprep.subr.bf16.mxu0 0
      %1807 = vmatpush1.bf16.msra.mxu0 0
      %1808 = vmatprep.subr.bf16.mxu0 0
      %1809 = vmatpush1.bf16.msra.mxu0 0
      %1810 = vmatprep.subr.bf16.mxu0 0
      %1811 = vmatpush1.bf16.msra.mxu0 0
      %1812 = vmatprep.mubr.bf16.mxu0 0
      %1813 = vmatmul.mubr.bf16.gmra.mrb[0].mxu0 %v1769
      %v1814 = vpop.f32.mrb[0].mxu0
      %v1815 = vadd.f32 0.0, %v1814
      %v1816 = vpop.f32.mrb[0].mxu0
      %v1817 = vpop.f32.mrb[0].mxu0
      %v1818 = vadd.f32 0.0, %v1817
      %v1819 = vpop.f32.mrb[0].mxu0
      %1820 = vmatprep.mubr.bf16.mxu0 0
      %1821 = vmatmul.mubr.bf16.gmra.mrb[0].mxu0 %v1772
      %v1822 = vpop.f32.mrb[0].mxu0
      %v1823 = vadd.f32 0.0, %v1822
      %v1824 = vpop.f32.mrb[0].mxu0
      %v1825 = vpop.f32.mrb[0].mxu0
      %v1826 = vadd.f32 0.0, %v1825
      %v1827 = vpop.f32.mrb[0].mxu0
      %1828 = vmatprep.mubr.bf16.mxu0 0
      %1829 = vmatmul.mubr.bf16.gmra.mrb[0].mxu0 %v1775
      %v1830 = vpop.f32.mrb[0].mxu0
      %v1831 = vadd.f32 0.0, %v1830
      %v1832 = vpop.f32.mrb[0].mxu0
      %v1833 = vpop.f32.mrb[0].mxu0
      %v1834 = vadd.f32 0.0, %v1833
      %v1835 = vpop.f32.mrb[0].mxu0
      %1836 = vdwg.mxu0
      %v1837 = vadd.f32 %v1739, %v1815
      %v1838 = vadd.f32 %v1740, %v1818
      %v1839 = vadd.f32 %v1741, %v1823
      %v1840 = vadd.f32 %v1742, %v1826
      %v1841 = vadd.f32 %v1743, %v1831
      %v1842 = vadd.f32 %v1744, %v1834
      %v1843 = vld [vmem:[%s1419] sm:$0xf]
      %v1844 = vld [vmem:[%s1419 + $0x4] sm:$0xf]
      %v1845 = vld [vmem:[%s1419 + $0x8] sm:$0xf]
      %v1846 = vld [vmem:[%s1419 + $0xc] sm:$0xf]
      %v1847 = vld [vmem:[%s1419 + $0x10] sm:$0xf]
      %v1848 = vld [vmem:[%s1419 + $0x14] sm:$0xf]
      %s1849 = scalar_lea.vmem %s3, 8
      %v1850 = vld [vmem:[%s1849] sm:$0x3]
      %v1857 = vunpack.c.l.b16 %v1843
      %v1858 = vunpack.c.l.b16 %v1844
      %v1859 = vunpack.c.l.b16 %v1845
      %v1860 = vunpack.c.l.b16 %v1846
      %v1861 = vunpack.c.l.b16 %v1847
      %v1862 = vunpack.c.l.b16 %v1848
      %v1863 = vpack.c.b16 %v1858, %v1857
      %v1864 = vpack.c.b16 %v1860, %v1859
      %v1865 = vpack.c.b16 %v1862, %v1861
      %v1867 = vsel %vm1459, %v1863, 0
      %v1870 = vsel %vm1459, %v1864, 0
      %v1873 = vsel %vm1459, %v1865, 0
      %v1876 = vsel %vm1469, %v1850, 0
      %1878 = vmatprep.subr.bf16.mxu0 0
      %1879 = vmatpush1.bf16.msra.mxu0 %v1876
      %1880 = vmatprep.subr.bf16.mxu0 0
      %1881 = vmatpush1.bf16.msra.mxu0 0
      %1882 = vmatprep.subr.bf16.mxu0 0
      %1883 = vmatpush1.bf16.msra.mxu0 0
      %1884 = vmatprep.subr.bf16.mxu0 0
      %1885 = vmatpush1.bf16.msra.mxu0 0
      %1886 = vmatprep.subr.bf16.mxu0 0
      %1887 = vmatpush1.bf16.msra.mxu0 0
      %1888 = vmatprep.subr.bf16.mxu0 0
      %1889 = vmatpush1.bf16.msra.mxu0 0
      %1890 = vmatprep.subr.bf16.mxu0 0
      %1891 = vmatpush1.bf16.msra.mxu0 0
      %1892 = vmatprep.subr.bf16.mxu0 0
      %1893 = vmatpush1.bf16.msra.mxu0 0
      %1894 = vmatprep.subr.bf16.mxu0 0
      %1895 = vmatpush1.bf16.msra.mxu0 0
      %1896 = vmatprep.subr.bf16.mxu0 0
      %1897 = vmatpush1.bf16.msra.mxu0 0
      %1898 = vmatprep.subr.bf16.mxu0 0
      %1899 = vmatpush1.bf16.msra.mxu0 0
      %1900 = vmatprep.subr.bf16.mxu0 0
      %1901 = vmatpush1.bf16.msra.mxu0 0
      %1902 = vmatprep.subr.bf16.mxu0 0
      %1903 = vmatpush1.bf16.msra.mxu0 0
      %1904 = vmatprep.subr.bf16.mxu0 0
      %1905 = vmatpush1.bf16.msra.mxu0 0
      %1906 = vmatprep.subr.bf16.mxu0 0
      %1907 = vmatpush1.bf16.msra.mxu0 0
      %1908 = vmatprep.subr.bf16.mxu0 0
      %1909 = vmatpush1.bf16.msra.mxu0 0
      %1910 = vmatprep.mubr.bf16.mxu0 0
      %1911 = vmatmul.mubr.bf16.gmra.mrb[0].mxu0 %v1867
      %v1912 = vpop.f32.mrb[0].mxu0
      %v1913 = vadd.f32 0.0, %v1912
      %v1914 = vpop.f32.mrb[0].mxu0
      %v1915 = vpop.f32.mrb[0].mxu0
      %v1916 = vadd.f32 0.0, %v1915
      %v1917 = vpop.f32.mrb[0].mxu0
      %1918 = vmatprep.mubr.bf16.mxu0 0
      %1919 = vmatmul.mubr.bf16.gmra.mrb[0].mxu0 %v1870
      %v1920 = vpop.f32.mrb[0].mxu0
      %v1921 = vadd.f32 0.0, %v1920
      %v1922 = vpop.f32.mrb[0].mxu0
      %v1923 = vpop.f32.mrb[0].mxu0
      %v1924 = vadd.f32 0.0, %v1923
      %v1925 = vpop.f32.mrb[0].mxu0
      %1926 = vmatprep.mubr.bf16.mxu0 0
      %1927 = vmatmul.mubr.bf16.gmra.mrb[0].mxu0 %v1873
      %v1928 = vpop.f32.mrb[0].mxu0
      %v1929 = vadd.f32 0.0, %v1928
      %v1930 = vpop.f32.mrb[0].mxu0
      %v1931 = vpop.f32.mrb[0].mxu0
      %v1932 = vadd.f32 0.0, %v1931
      %v1933 = vpop.f32.mrb[0].mxu0
      %1934 = vdwg.mxu0
      %v1935 = vadd.f32 %v1837, %v1913
      %v1936 = vadd.f32 %v1838, %v1916
      %v1937 = vadd.f32 %v1839, %v1921
      %v1938 = vadd.f32 %v1840, %v1924
      %v1939 = vadd.f32 %v1841, %v1929
      %v1940 = vadd.f32 %v1842, %v1932
      %v1941 = vld [vmem:[%s1196] sm:$0xf]
      %v1942 = vld [vmem:[%s1196 + $0x4] sm:$0xf]
      %v1943 = vld [vmem:[%s1196 + $0x8] sm:$0xf]
      %v1944 = vld [vmem:[%s1196 + $0xc] sm:$0xf]
      %v1945 = vld [vmem:[%s1196 + $0x10] sm:$0xf]
      %v1946 = vld [vmem:[%s1196 + $0x14] sm:$0xf]
      %v1947 = vld [vmem:[%s1196 + $0x18] sm:$0x1]
      %s1948 = scalar_lea.vmem %s3, 10
      %v1949 = vld [vmem:[%s1948] sm:$0x3]
      %v1957 = vunpack.c.l.b16 %v1941
      %v1958 = vunpack.c.l.b16 %v1942
      %v1959 = vunpack.c.l.b16 %v1943
      %v1960 = vunpack.c.l.b16 %v1944
      %v1961 = vunpack.c.l.b16 %v1945
      %v1962 = vunpack.c.l.b16 %v1946
      %v1963 = vunpack.c.l.b16 %v1947
      %v1964 = vpack.c.b16 %v1958, %v1957
      %v1965 = vpack.c.b16 %v1960, %v1959
      %v1966 = vpack.c.b16 %v1962, %v1961
      %v1967 = vpack.c.b16 %v1963, %v1963
      %v1969 = vshrl.u32 %v1964, 16
      %v1971 = vshll.u32 %v1964, 16
      %v1973 = vrot.slane %v1971, 1
      %v1974 = vor.u32 %v1969, %v1973
      %v1976 = vshll.u32 %v1965, 16
      %v1978 = vrot.slane %v1976, 1
      %v1979 = vsel %vm1641, %v1974, %v1978
      %v1980 = vshrl.u32 %v1965, 16
      %v1982 = vor.u32 %v1980, %v1978
      %v1984 = vshll.u32 %v1966, 16
      %v1986 = vrot.slane %v1984, 1
      %v1987 = vsel %vm1641, %v1982, %v1986
      %v1988 = vshrl.u32 %v1966, 16
      %v1990 = vor.u32 %v1988, %v1986
      %v1992 = vshll.u32 %v1967, 16
      %v1994 = vrot.slane %v1992, 1
      %v1995 = vsel %vm1641, %v1990, %v1994
      %v1997 = vsel %vm1459, %v1979, 0
      %v2000 = vsel %vm1459, %v1987, 0
      %v2003 = vsel %vm1459, %v1995, 0
      %v2006 = vsel %vm1469, %v1949, 0
      %2008 = vmatprep.subr.bf16.mxu0 0
      %2009 = vmatpush1.bf16.msra.mxu0 %v2006
      %2010 = vmatprep.subr.bf16.mxu0 0
      %2011 = vmatpush1.bf16.msra.mxu0 0
      %2012 = vmatprep.subr.bf16.mxu0 0
      %2013 = vmatpush1.bf16.msra.mxu0 0
      %2014 = vmatprep.subr.bf16.mxu0 0
      %2015 = vmatpush1.bf16.msra.mxu0 0
      %2016 = vmatprep.subr.bf16.mxu0 0
      %2017 = vmatpush1.bf16.msra.mxu0 0
      %2018 = vmatprep.subr.bf16.mxu0 0
      %2019 = vmatpush1.bf16.msra.mxu0 0
      %2020 = vmatprep.subr.bf16.mxu0 0
      %2021 = vmatpush1.bf16.msra.mxu0 0
      %2022 = vmatprep.subr.bf16.mxu0 0
      %2023 = vmatpush1.bf16.msra.mxu0 0
      %2024 = vmatprep.subr.bf16.mxu0 0
      %2025 = vmatpush1.bf16.msra.mxu0 0
      %2026 = vmatprep.subr.bf16.mxu0 0
      %2027 = vmatpush1.bf16.msra.mxu0 0
      %2028 = vmatprep.subr.bf16.mxu0 0
      %2029 = vmatpush1.bf16.msra.mxu0 0
      %2030 = vmatprep.subr.bf16.mxu0 0
      %2031 = vmatpush1.bf16.msra.mxu0 0
      %2032 = vmatprep.subr.bf16.mxu0 0
      %2033 = vmatpush1.bf16.msra.mxu0 0
      %2034 = vmatprep.subr.bf16.mxu0 0
      %2035 = vmatpush1.bf16.msra.mxu0 0
      %2036 = vmatprep.subr.bf16.mxu0 0
      %2037 = vmatpush1.bf16.msra.mxu0 0
      %2038 = vmatprep.subr.bf16.mxu0 0
      %2039 = vmatpush1.bf16.msra.mxu0 0
      %2040 = vmatprep.mubr.bf16.mxu0 0
      %2041 = vmatmul.mubr.bf16.gmra.mrb[0].mxu0 %v1997
      %v2042 = vpop.f32.mrb[0].mxu0
      %v2043 = vadd.f32 0.0, %v2042
      %v2044 = vpop.f32.mrb[0].mxu0
      %v2045 = vpop.f32.mrb[0].mxu0
      %v2046 = vadd.f32 0.0, %v2045
      %v2047 = vpop.f32.mrb[0].mxu0
      %2048 = vmatprep.mubr.bf16.mxu0 0
      %2049 = vmatmul.mubr.bf16.gmra.mrb[0].mxu0 %v2000
      %v2050 = vpop.f32.mrb[0].mxu0
      %v2051 = vadd.f32 0.0, %v2050
      %v2052 = vpop.f32.mrb[0].mxu0
      %v2053 = vpop.f32.mrb[0].mxu0
      %v2054 = vadd.f32 0.0, %v2053
      %v2055 = vpop.f32.mrb[0].mxu0
      %2056 = vmatprep.mubr.bf16.mxu0 0
      %2057 = vmatmul.mubr.bf16.gmra.mrb[0].mxu0 %v2003
      %v2058 = vpop.f32.mrb[0].mxu0
      %v2059 = vadd.f32 0.0, %v2058
      %v2060 = vpop.f32.mrb[0].mxu0
      %v2061 = vpop.f32.mrb[0].mxu0
      %v2062 = vadd.f32 0.0, %v2061
      %v2063 = vpop.f32.mrb[0].mxu0
      %2064 = vdwg.mxu0
      %v2065 = vadd.f32 %v1935, %v2043
      %v2066 = vadd.f32 %v1936, %v2046
      %v2067 = vadd.f32 %v1937, %v2051
      %v2068 = vadd.f32 %v1938, %v2054
      %v2069 = vadd.f32 %v1939, %v2059
      %v2070 = vadd.f32 %v1940, %v2062
      %v2071 = vld [vmem:[#allocation2 + $0x8] sm:$0xf]
      %v2072 = vld [vmem:[#allocation2 + $0xc] sm:$0xf]
      %v2073 = vld [vmem:[#allocation2 + $0x10] sm:$0xf]
      %v2074 = vld [vmem:[#allocation2 + $0x14] sm:$0xf]
      %v2075 = vld [vmem:[#allocation2 + $0x18] sm:$0xf]
      %v2076 = vld [vmem:[#allocation2 + $0x1c] sm:$0xf]
      %s2077 = scalar_lea.vmem %s3, 12
      %v2078 = vld [vmem:[%s2077] sm:$0x3]
      %v2085 = vunpack.c.l.b16 %v2071
      %v2086 = vunpack.c.l.b16 %v2072
      %v2087 = vunpack.c.l.b16 %v2073
      %v2088 = vunpack.c.l.b16 %v2074
      %v2089 = vunpack.c.l.b16 %v2075
      %v2090 = vunpack.c.l.b16 %v2076
      %v2091 = vpack.c.b16 %v2086, %v2085
      %v2092 = vpack.c.b16 %v2088, %v2087
      %v2093 = vpack.c.b16 %v2090, %v2089
      %v2095 = vsel %vm1459, %v2091, 0
      %v2098 = vsel %vm1459, %v2092, 0
      %v2101 = vsel %vm1459, %v2093, 0
      %v2104 = vsel %vm1469, %v2078, 0
      %2106 = vmatprep.subr.bf16.mxu0 0
      %2107 = vmatpush1.bf16.msra.mxu0 %v2104
      %2108 = vmatprep.subr.bf16.mxu0 0
      %2109 = vmatpush1.bf16.msra.mxu0 0
      %2110 = vmatprep.subr.bf16.mxu0 0
      %2111 = vmatpush1.bf16.msra.mxu0 0
      %2112 = vmatprep.subr.bf16.mxu0 0
      %2113 = vmatpush1.bf16.msra.mxu0 0
      %2114 = vmatprep.subr.bf16.mxu0 0
      %2115 = vmatpush1.bf16.msra.mxu0 0
      %2116 = vmatprep.subr.bf16.mxu0 0
      %2117 = vmatpush1.bf16.msra.mxu0 0
      %2118 = vmatprep.subr.bf16.mxu0 0
      %2119 = vmatpush1.bf16.msra.mxu0 0
      %2120 = vmatprep.subr.bf16.mxu0 0
      %2121 = vmatpush1.bf16.msra.mxu0 0
      %2122 = vmatprep.subr.bf16.mxu0 0
      %2123 = vmatpush1.bf16.msra.mxu0 0
      %2124 = vmatprep.subr.bf16.mxu0 0
      %2125 = vmatpush1.bf16.msra.mxu0 0
      %2126 = vmatprep.subr.bf16.mxu0 0
      %2127 = vmatpush1.bf16.msra.mxu0 0
      %2128 = vmatprep.subr.bf16.mxu0 0
      %2129 = vmatpush1.bf16.msra.mxu0 0
      %2130 = vmatprep.subr.bf16.mxu0 0
      %2131 = vmatpush1.bf16.msra.mxu0 0
      %2132 = vmatprep.subr.bf16.mxu0 0
      %2133 = vmatpush1.bf16.msra.mxu0 0
      %2134 = vmatprep.subr.bf16.mxu0 0
      %2135 = vmatpush1.bf16.msra.mxu0 0
      %2136 = vmatprep.subr.bf16.mxu0 0
      %2137 = vmatpush1.bf16.msra.mxu0 0
      %2138 = vmatprep.mubr.bf16.mxu0 0
      %2139 = vmatmul.mubr.bf16.gmra.mrb[0].mxu0 %v2095
      %v2140 = vpop.f32.mrb[0].mxu0
      %v2141 = vadd.f32 0.0, %v2140
      %v2142 = vpop.f32.mrb[0].mxu0
      %v2143 = vpop.f32.mrb[0].mxu0
      %v2144 = vadd.f32 0.0, %v2143
      %v2145 = vpop.f32.mrb[0].mxu0
      %2146 = vmatprep.mubr.bf16.mxu0 0
      %2147 = vmatmul.mubr.bf16.gmra.mrb[0].mxu0 %v2098
      %v2148 = vpop.f32.mrb[0].mxu0
      %v2149 = vadd.f32 0.0, %v2148
      %v2150 = vpop.f32.mrb[0].mxu0
      %v2151 = vpop.f32.mrb[0].mxu0
      %v2152 = vadd.f32 0.0, %v2151
      %v2153 = vpop.f32.mrb[0].mxu0
      %2154 = vmatprep.mubr.bf16.mxu0 0
      %2155 = vmatmul.mubr.bf16.gmra.mrb[0].mxu0 %v2101
      %v2156 = vpop.f32.mrb[0].mxu0
      %v2157 = vadd.f32 0.0, %v2156
      %v2158 = vpop.f32.mrb[0].mxu0
      %v2159 = vpop.f32.mrb[0].mxu0
      %v2160 = vadd.f32 0.0, %v2159
      %v2161 = vpop.f32.mrb[0].mxu0
      %2162 = vdwg.mxu0
      %v2163 = vadd.f32 %v2065, %v2141
      %v2164 = vadd.f32 %v2066, %v2144
      %v2165 = vadd.f32 %v2067, %v2149
      %v2166 = vadd.f32 %v2068, %v2152
      %v2167 = vadd.f32 %v2069, %v2157
      %v2168 = vadd.f32 %v2070, %v2160
      %v2169 = vld [vmem:[%s937 + $0x8] sm:$0xf]
      %v2170 = vld [vmem:[%s937 + $0xc] sm:$0xf]
      %v2171 = vld [vmem:[%s937 + $0x10] sm:$0xf]
      %v2172 = vld [vmem:[%s937 + $0x14] sm:$0xf]
      %v2173 = vld [vmem:[%s937 + $0x18] sm:$0xf]
      %v2174 = vld [vmem:[%s937 + $0x1c] sm:$0xf]
      %s2175 = scalar_lea.vmem %s3, 14
      %v2176 = vld [vmem:[%s2175] sm:$0x3]
      %v2183 = vunpack.c.l.b16 %v2169
      %v2184 = vunpack.c.l.b16 %v2170
      %v2185 = vunpack.c.l.b16 %v2171
      %v2186 = vunpack.c.l.b16 %v2172
      %v2187 = vunpack.c.l.b16 %v2173
      %v2188 = vunpack.c.l.b16 %v2174
      %v2189 = vpack.c.b16 %v2184, %v2183
      %v2190 = vpack.c.b16 %v2186, %v2185
      %v2191 = vpack.c.b16 %v2188, %v2187
      %v2193 = vsel %vm1459, %v2189, 0
      %v2196 = vsel %vm1459, %v2190, 0
      %v2199 = vsel %vm1459, %v2191, 0
      %v2202 = vsel %vm1469, %v2176, 0
      %2204 = vmatprep.subr.bf16.mxu0 0
      %2205 = vmatpush1.bf16.msra.mxu0 %v2202
      %2206 = vmatprep.subr.bf16.mxu0 0
      %2207 = vmatpush1.bf16.msra.mxu0 0
      %2208 = vmatprep.subr.bf16.mxu0 0
      %2209 = vmatpush1.bf16.msra.mxu0 0
      %2210 = vmatprep.subr.bf16.mxu0 0
      %2211 = vmatpush1.bf16.msra.mxu0 0
      %2212 = vmatprep.subr.bf16.mxu0 0
      %2213 = vmatpush1.bf16.msra.mxu0 0
      %2214 = vmatprep.subr.bf16.mxu0 0
      %2215 = vmatpush1.bf16.msra.mxu0 0
      %2216 = vmatprep.subr.bf16.mxu0 0
      %2217 = vmatpush1.bf16.msra.mxu0 0
      %2218 = vmatprep.subr.bf16.mxu0 0
      %2219 = vmatpush1.bf16.msra.mxu0 0
      %2220 = vmatprep.subr.bf16.mxu0 0
      %2221 = vmatpush1.bf16.msra.mxu0 0
      %2222 = vmatprep.subr.bf16.mxu0 0
      %2223 = vmatpush1.bf16.msra.mxu0 0
      %2224 = vmatprep.subr.bf16.mxu0 0
      %2225 = vmatpush1.bf16.msra.mxu0 0
      %2226 = vmatprep.subr.bf16.mxu0 0
      %2227 = vmatpush1.bf16.msra.mxu0 0
      %2228 = vmatprep.subr.bf16.mxu0 0
      %2229 = vmatpush1.bf16.msra.mxu0 0
      %2230 = vmatprep.subr.bf16.mxu0 0
      %2231 = vmatpush1.bf16.msra.mxu0 0
      %2232 = vmatprep.subr.bf16.mxu0 0
      %2233 = vmatpush1.bf16.msra.mxu0 0
      %2234 = vmatprep.subr.bf16.mxu0 0
      %2235 = vmatpush1.bf16.msra.mxu0 0
      %2236 = vmatprep.mubr.bf16.mxu0 0
      %2237 = vmatmul.mubr.bf16.gmra.mrb[0].mxu0 %v2193
      %v2238 = vpop.f32.mrb[0].mxu0
      %v2239 = vadd.f32 0.0, %v2238
      %v2240 = vpop.f32.mrb[0].mxu0
      %v2241 = vpop.f32.mrb[0].mxu0
      %v2242 = vadd.f32 0.0, %v2241
      %v2243 = vpop.f32.mrb[0].mxu0
      %2244 = vmatprep.mubr.bf16.mxu0 0
      %2245 = vmatmul.mubr.bf16.gmra.mrb[0].mxu0 %v2196
      %v2246 = vpop.f32.mrb[0].mxu0
      %v2247 = vadd.f32 0.0, %v2246
      %v2248 = vpop.f32.mrb[0].mxu0
      %v2249 = vpop.f32.mrb[0].mxu0
      %v2250 = vadd.f32 0.0, %v2249
      %v2251 = vpop.f32.mrb[0].mxu0
      %2252 = vmatprep.mubr.bf16.mxu0 0
      %2253 = vmatmul.mubr.bf16.gmra.mrb[0].mxu0 %v2199
      %v2254 = vpop.f32.mrb[0].mxu0
      %v2255 = vadd.f32 0.0, %v2254
      %v2256 = vpop.f32.mrb[0].mxu0
      %v2257 = vpop.f32.mrb[0].mxu0
      %v2258 = vadd.f32 0.0, %v2257
      %v2259 = vpop.f32.mrb[0].mxu0
      %2260 = vdwg.mxu0
      %v2261 = vadd.f32 %v2163, %v2239
      %v2262 = vadd.f32 %v2164, %v2242
      %v2263 = vadd.f32 %v2165, %v2247
      %v2264 = vadd.f32 %v2166, %v2250
      %v2265 = vadd.f32 %v2167, %v2255
      %v2266 = vadd.f32 %v2168, %v2258
      %v2267 = vld [vmem:[#allocation2 + $0x8] sm:$0xf]
      %v2268 = vld [vmem:[#allocation2 + $0xc] sm:$0xf]
      %v2269 = vld [vmem:[#allocation2 + $0x10] sm:$0xf]
      %v2270 = vld [vmem:[#allocation2 + $0x14] sm:$0xf]
      %v2271 = vld [vmem:[#allocation2 + $0x18] sm:$0xf]
      %v2272 = vld [vmem:[#allocation2 + $0x1c] sm:$0xf]
      %v2273 = vld [vmem:[#allocation2 + $0x20] sm:$0x1]
      %s2274 = scalar_lea.vmem %s3, 16
      %v2275 = vld [vmem:[%s2274] sm:$0x3]
      %v2283 = vunpack.c.l.b16 %v2267
      %v2284 = vunpack.c.l.b16 %v2268
      %v2285 = vunpack.c.l.b16 %v2269
      %v2286 = vunpack.c.l.b16 %v2270
      %v2287 = vunpack.c.l.b16 %v2271
      %v2288 = vunpack.c.l.b16 %v2272
      %v2289 = vunpack.c.l.b16 %v2273
      %v2290 = vpack.c.b16 %v2284, %v2283
      %v2291 = vpack.c.b16 %v2286, %v2285
      %v2292 = vpack.c.b16 %v2288, %v2287
      %v2293 = vpack.c.b16 %v2289, %v2289
      %v2295 = vshrl.u32 %v2290, 16
      %v2297 = vshll.u32 %v2290, 16
      %v2299 = vrot.slane %v2297, 1
      %v2300 = vor.u32 %v2295, %v2299
      %v2302 = vshll.u32 %v2291, 16
      %v2304 = vrot.slane %v2302, 1
      %v2305 = vsel %vm1641, %v2300, %v2304
      %v2306 = vshrl.u32 %v2291, 16
      %v2308 = vor.u32 %v2306, %v2304
      %v2310 = vshll.u32 %v2292, 16
      %v2312 = vrot.slane %v2310, 1
      %v2313 = vsel %vm1641, %v2308, %v2312
      %v2314 = vshrl.u32 %v2292, 16
      %v2316 = vor.u32 %v2314, %v2312
      %v2318 = vshll.u32 %v2293, 16
      %v2320 = vrot.slane %v2318, 1
      %v2321 = vsel %vm1641, %v2316, %v2320
      %v2323 = vsel %vm1459, %v2305, 0
      %v2326 = vsel %vm1459, %v2313, 0
      %v2329 = vsel %vm1459, %v2321, 0
      %v2332 = vsel %vm1469, %v2275, 0
      %2334 = vmatprep.subr.bf16.mxu0 0
      %2335 = vmatpush1.bf16.msra.mxu0 %v2332
      %2336 = vmatprep.subr.bf16.mxu0 0
      %2337 = vmatpush1.bf16.msra.mxu0 0
      %2338 = vmatprep.subr.bf16.mxu0 0
      %2339 = vmatpush1.bf16.msra.mxu0 0
      %2340 = vmatprep.subr.bf16.mxu0 0
      %2341 = vmatpush1.bf16.msra.mxu0 0
      %2342 = vmatprep.subr.bf16.mxu0 0
      %2343 = vmatpush1.bf16.msra.mxu0 0
      %2344 = vmatprep.subr.bf16.mxu0 0
      %2345 = vmatpush1.bf16.msra.mxu0 0
      %2346 = vmatprep.subr.bf16.mxu0 0
      %2347 = vmatpush1.bf16.msra.mxu0 0
      %2348 = vmatprep.subr.bf16.mxu0 0
      %2349 = vmatpush1.bf16.msra.mxu0 0
      %2350 = vmatprep.subr.bf16.mxu0 0
      %2351 = vmatpush1.bf16.msra.mxu0 0
      %2352 = vmatprep.subr.bf16.mxu0 0
      %2353 = vmatpush1.bf16.msra.mxu0 0
      %2354 = vmatprep.subr.bf16.mxu0 0
      %2355 = vmatpush1.bf16.msra.mxu0 0
      %2356 = vmatprep.subr.bf16.mxu0 0
      %2357 = vmatpush1.bf16.msra.mxu0 0
      %2358 = vmatprep.subr.bf16.mxu0 0
      %2359 = vmatpush1.bf16.msra.mxu0 0
      %2360 = vmatprep.subr.bf16.mxu0 0
      %2361 = vmatpush1.bf16.msra.mxu0 0
      %2362 = vmatprep.subr.bf16.mxu0 0
      %2363 = vmatpush1.bf16.msra.mxu0 0
      %2364 = vmatprep.subr.bf16.mxu0 0
      %2365 = vmatpush1.bf16.msra.mxu0 0
      %2366 = vmatprep.mubr.bf16.mxu0 0
      %2367 = vmatmul.mubr.bf16.gmra.mrb[0].mxu0 %v2323
      %v2368 = vpop.f32.mrb[0].mxu0
      %v2369 = vadd.f32 0.0, %v2368
      %v2370 = vpop.f32.mrb[0].mxu0
      %v2371 = vpop.f32.mrb[0].mxu0
      %v2372 = vadd.f32 0.0, %v2371
      %v2373 = vpop.f32.mrb[0].mxu0
      %2374 = vmatprep.mubr.bf16.mxu0 0
      %2375 = vmatmul.mubr.bf16.gmra.mrb[0].mxu0 %v2326
      %v2376 = vpop.f32.mrb[0].mxu0
      %v2377 = vadd.f32 0.0, %v2376
      %v2378 = vpop.f32.mrb[0].mxu0
      %v2379 = vpop.f32.mrb[0].mxu0
      %v2380 = vadd.f32 0.0, %v2379
      %v2381 = vpop.f32.mrb[0].mxu0
      %2382 = vmatprep.mubr.bf16.mxu0 0
      %2383 = vmatmul.mubr.bf16.gmra.mrb[0].mxu0 %v2329
      %v2384 = vpop.f32.mrb[0].mxu0
      %v2385 = vadd.f32 0.0, %v2384
      %v2386 = vpop.f32.mrb[0].mxu0
      %v2387 = vpop.f32.mrb[0].mxu0
      %v2388 = vadd.f32 0.0, %v2387
      %v2389 = vpop.f32.mrb[0].mxu0
      %2390 = vdwg.mxu0
      %v2391 = vadd.f32 %v2261, %v2369
      %v2392 = vadd.f32 %v2262, %v2372
      %v2393 = vadd.f32 %v2263, %v2377
      %v2394 = vadd.f32 %v2264, %v2380
      %v2395 = vadd.f32 %v2265, %v2385
      %v2396 = vadd.f32 %v2266, %v2388
      %v2397 = vld [vmem:[%s4] sm:$0x1]
      %v2399 = vlaneseq
      %v2400 = vshrl.u32 %v2399, 7
      %v2401 = vsub.s32 0, %v2400
      %v2402 = vrot.slane %v2397, %v2401
      %v2404 = vadd.f32 %v2391, %v2402
      %v2405 = vadd.f32 %v2392, %v2402
      %v2406 = vadd.f32 %v2393, %v2402
      %v2407 = vadd.f32 %v2394, %v2402
      %v2408 = vadd.f32 %v2395, %v2402
      %v2409 = vadd.f32 %v2396, %v2402
      %v2410 = vmax.f32 %v2404, 0.0
      %v2411 = vmax.f32 %v2405, 0.0
      %v2412 = vmax.f32 %v2406, 0.0
      %v2413 = vmax.f32 %v2407, 0.0
      %v2414 = vmax.f32 %v2408, 0.0
      %v2415 = vmax.f32 %v2409, 0.0
      %v2416 = vpack.c.bf16 %v2411, %v2410
      %v2417 = vpack.c.bf16 %v2413, %v2412
      %v2418 = vpack.c.bf16 %v2415, %v2414
      %v2419 = vld [vmem:[%s1208] sm:$0xf]
      %v2420 = vld [vmem:[%s1208 + $0x4] sm:$0xf]
      %v2421 = vld [vmem:[%s1208 + $0x8] sm:$0xf]
      %v2422 = vld [vmem:[%s1208 + $0xc] sm:$0xf]
      %v2423 = vld [vmem:[%s1208 + $0x10] sm:$0xf]
      %v2424 = vld [vmem:[%s1208 + $0x14] sm:$0xf]
      %v2425 = vld [vmem:[%s7] sm:$0xf]
      %v2426 = vld [vmem:[%s8] sm:$0x1]
      %v2428 = vlaneseq
      %v2429 = vshrl.u32 %v2428, 7
      %v2430 = vsub.s32 0, %v2429
      %v2431 = vrot.slane %v2426, %v2430
      %v2439 = vunpack.c.l.b16 %v2419
      %v2440 = vunpack.c.l.b16 %v2420
      %v2441 = vunpack.c.l.b16 %v2421
      %v2442 = vunpack.c.l.b16 %v2422
      %v2443 = vunpack.c.l.b16 %v2423
      %v2444 = vunpack.c.l.b16 %v2424
      %v2445 = vpack.c.b16 %v2440, %v2439
      %v2446 = vpack.c.b16 %v2442, %v2441
      %v2447 = vpack.c.b16 %v2444, %v2443
      %v2449 = vsel %vm441, %v2445, 0
      %v2452 = vsel %vm441, %v2446, 0
      %v2455 = vsel %vm441, %v2447, 0
      %v2458 = vsel %vm457, %v2425, 0
      %2460 = vmatprep.subr.bf16.mxu0 0
      %2461 = vmatpush1.bf16.msra.mxu0 %v2458
      %2462 = vmatprep.subr.bf16.mxu0 0
      %2463 = vmatpush1.bf16.msra.mxu0 0
      %2464 = vmatprep.subr.bf16.mxu0 0
      %2465 = vmatpush1.bf16.msra.mxu0 0
      %2466 = vmatprep.subr.bf16.mxu0 0
      %2467 = vmatpush1.bf16.msra.mxu0 0
      %2468 = vmatprep.subr.bf16.mxu0 0
      %2469 = vmatpush1.bf16.msra.mxu0 0
      %2470 = vmatprep.subr.bf16.mxu0 0
      %2471 = vmatpush1.bf16.msra.mxu0 0
      %2472 = vmatprep.subr.bf16.mxu0 0
      %2473 = vmatpush1.bf16.msra.mxu0 0
      %2474 = vmatprep.subr.bf16.mxu0 0
      %2475 = vmatpush1.bf16.msra.mxu0 0
      %2476 = vmatprep.subr.bf16.mxu0 0
      %2477 = vmatpush1.bf16.msra.mxu0 0
      %2478 = vmatprep.subr.bf16.mxu0 0
      %2479 = vmatpush1.bf16.msra.mxu0 0
      %2480 = vmatprep.subr.bf16.mxu0 0
      %2481 = vmatpush1.bf16.msra.mxu0 0
      %2482 = vmatprep.subr.bf16.mxu0 0
      %2483 = vmatpush1.bf16.msra.mxu0 0
      %2484 = vmatprep.subr.bf16.mxu0 0
      %2485 = vmatpush1.bf16.msra.mxu0 0
      %2486 = vmatprep.subr.bf16.mxu0 0
      %2487 = vmatpush1.bf16.msra.mxu0 0
      %2488 = vmatprep.subr.bf16.mxu0 0
      %2489 = vmatpush1.bf16.msra.mxu0 0
      %2490 = vmatprep.subr.bf16.mxu0 0
      %2491 = vmatpush1.bf16.msra.mxu0 0
      %2492 = vmatprep.mubr.bf16.mxu0 0
      %2493 = vmatmul.mubr.bf16.gmra.mrb[0].mxu0 %v2449
      %v2494 = vpop.f32.mrb[0].mxu0
      %v2495 = vadd.f32 %v2431, %v2494
      %v2496 = vpop.f32.mrb[0].mxu0
      %v2497 = vpop.f32.mrb[0].mxu0
      %v2498 = vadd.f32 %v2431, %v2497
      %v2499 = vpop.f32.mrb[0].mxu0
      %2500 = vmatprep.mubr.bf16.mxu0 0
      %2501 = vmatmul.mubr.bf16.gmra.mrb[0].mxu0 %v2452
      %v2502 = vpop.f32.mrb[0].mxu0
      %v2503 = vadd.f32 %v2431, %v2502
      %v2504 = vpop.f32.mrb[0].mxu0
      %v2505 = vpop.f32.mrb[0].mxu0
      %v2506 = vadd.f32 %v2431, %v2505
      %v2507 = vpop.f32.mrb[0].mxu0
      %2508 = vmatprep.mubr.bf16.mxu0 0
      %2509 = vmatmul.mubr.bf16.gmra.mrb[0].mxu0 %v2455
      %v2510 = vpop.f32.mrb[0].mxu0
      %v2511 = vadd.f32 %v2431, %v2510
      %v2512 = vpop.f32.mrb[0].mxu0
      %v2513 = vpop.f32.mrb[0].mxu0
      %v2514 = vadd.f32 %v2431, %v2513
      %v2515 = vpop.f32.mrb[0].mxu0
      %2516 = vdwg.mxu0
      %v2517 = vld [vmem:[%s5] sm:$0x3]
      %v2518 = vld [vmem:[%s6] sm:$0x1]
      %v2520 = vlaneseq
      %v2521 = vshrl.u32 %v2520, 7
      %v2522 = vsub.s32 0, %v2521
      %v2523 = vrot.slane %v2518, %v2522
      %v2526 = vsel %vm1459, %v2416, 0
      %v2529 = vsel %vm1459, %v2417, 0
      %v2532 = vsel %vm1459, %v2418, 0
      %v2535 = vsel %vm1469, %v2517, 0
      %2537 = vmatprep.subr.bf16.mxu0 0
      %2538 = vmatpush1.bf16.msra.mxu0 %v2535
      %2539 = vmatprep.subr.bf16.mxu0 0
      %2540 = vmatpush1.bf16.msra.mxu0 0
      %2541 = vmatprep.subr.bf16.mxu0 0
      %2542 = vmatpush1.bf16.msra.mxu0 0
      %2543 = vmatprep.subr.bf16.mxu0 0
      %2544 = vmatpush1.bf16.msra.mxu0 0
      %2545 = vmatprep.subr.bf16.mxu0 0
      %2546 = vmatpush1.bf16.msra.mxu0 0
      %2547 = vmatprep.subr.bf16.mxu0 0
      %2548 = vmatpush1.bf16.msra.mxu0 0
      %2549 = vmatprep.subr.bf16.mxu0 0
      %2550 = vmatpush1.bf16.msra.mxu0 0
      %2551 = vmatprep.subr.bf16.mxu0 0
      %2552 = vmatpush1.bf16.msra.mxu0 0
      %2553 = vmatprep.subr.bf16.mxu0 0
      %2554 = vmatpush1.bf16.msra.mxu0 0
      %2555 = vmatprep.subr.bf16.mxu0 0
      %2556 = vmatpush1.bf16.msra.mxu0 0
      %2557 = vmatprep.subr.bf16.mxu0 0
      %2558 = vmatpush1.bf16.msra.mxu0 0
      %2559 = vmatprep.subr.bf16.mxu0 0
      %2560 = vmatpush1.bf16.msra.mxu0 0
      %2561 = vmatprep.subr.bf16.mxu0 0
      %2562 = vmatpush1.bf16.msra.mxu0 0
      %2563 = vmatprep.subr.bf16.mxu0 0
      %2564 = vmatpush1.bf16.msra.mxu0 0
      %2565 = vmatprep.subr.bf16.mxu0 0
      %2566 = vmatpush1.bf16.msra.mxu0 0
      %2567 = vmatprep.subr.bf16.mxu0 0
      %2568 = vmatpush1.bf16.msra.mxu0 0
      %2569 = vmatprep.mubr.bf16.mxu0 0
      %2570 = vmatmul.mubr.bf16.gmra.mrb[0].mxu0 %v2526
      %v2571 = vpop.f32.mrb[0].mxu0
      %v2572 = vadd.f32 %v2523, %v2571
      %v2573 = vpop.f32.mrb[0].mxu0
      %v2574 = vpop.f32.mrb[0].mxu0
      %v2575 = vadd.f32 %v2523, %v2574
      %v2576 = vpop.f32.mrb[0].mxu0
      %2577 = vmatprep.mubr.bf16.mxu0 0
      %2578 = vmatmul.mubr.bf16.gmra.mrb[0].mxu0 %v2529
      %v2579 = vpop.f32.mrb[0].mxu0
      %v2580 = vadd.f32 %v2523, %v2579
      %v2581 = vpop.f32.mrb[0].mxu0
      %v2582 = vpop.f32.mrb[0].mxu0
      %v2583 = vadd.f32 %v2523, %v2582
      %v2584 = vpop.f32.mrb[0].mxu0
      %2585 = vmatprep.mubr.bf16.mxu0 0
      %2586 = vmatmul.mubr.bf16.gmra.mrb[0].mxu0 %v2532
      %v2587 = vpop.f32.mrb[0].mxu0
      %v2588 = vadd.f32 %v2523, %v2587
      %v2589 = vpop.f32.mrb[0].mxu0
      %v2590 = vpop.f32.mrb[0].mxu0
      %v2591 = vadd.f32 %v2523, %v2590
      %v2592 = vpop.f32.mrb[0].mxu0
      %2593 = vdwg.mxu0
      %v2594 = vadd.f32 %v2572, %v2495
      %v2595 = vadd.f32 %v2575, %v2498
      %v2596 = vadd.f32 %v2580, %v2503
      %v2597 = vadd.f32 %v2583, %v2506
      %v2598 = vadd.f32 %v2588, %v2511
      %v2599 = vadd.f32 %v2591, %v2514
      %v2600 = vmax.f32 %v2594, 0.0
      %v2601 = vmax.f32 %v2595, 0.0
      %v2602 = vmax.f32 %v2596, 0.0
      %v2603 = vmax.f32 %v2597, 0.0
      %v2604 = vmax.f32 %v2598, 0.0
      %v2605 = vmax.f32 %v2599, 0.0
      %v2606 = vpack.c.bf16 %v2601, %v2600
      %v2607 = vpack.c.bf16 %v2603, %v2602
      %v2608 = vpack.c.bf16 %v2605, %v2604
      %v2612 = vunpack.c.l.b16 %v2606
      %v2613 = vunpack.c.h.b16 %v2606
      %v2614 = vunpack.c.l.b16 %v2607
      %v2615 = vunpack.c.h.b16 %v2607
      %v2616 = vunpack.c.l.b16 %v2608
      %v2617 = vunpack.c.h.b16 %v2608
      %v2618 = vpack.c.b16 %v2612, %v2612
      %v2619 = vpack.c.b16 %v2613, %v2613
      %v2620 = vpack.c.b16 %v2614, %v2614
      %v2621 = vpack.c.b16 %v2615, %v2615
      %v2622 = vpack.c.b16 %v2616, %v2616
      %v2623 = vpack.c.b16 %v2617, %v2617
      %vm2630 = vcmask 125952
      %2631 = vst.msk [vmem:[%s354] sm:$0xf] %vm2630, %v2618
      %2632 = vst.msk [vmem:[%s354 + $0x4] sm:$0xf] %vm2630, %v2619
      %2633 = vst.msk [vmem:[%s354 + $0x8] sm:$0xf] %vm2630, %v2620
      %2634 = vst.msk [vmem:[%s354 + $0xc] sm:$0xf] %vm2630, %v2621
      %2635 = vst.msk [vmem:[%s354 + $0x10] sm:$0xf] %vm2630, %v2622
      %2636 = vst.msk [vmem:[%s354 + $0x14] sm:$0xf] %vm2630, %v2623
      %s2637 = smul.u32 6, %s25
      %p2638 = scmp.lt.s32.totalorder %s24, 1
      %s2639 = scalar_select %p2638, %s24, 1
      %p2640 = scmp.lt.s32.totalorder %s2637, 17
      %s2641 = scalar_select %p2640, %s2637, 17
      %s2642 = smul.addr %s2639, 18
      %s2643 = sadd.s32 %s2641, %s2642
      %s2644 = smul.addr %s2643, 4
      %s2645 = scalar_lea.vmem %s9, %s2644
      // Predicated region
      $region57: #{tpu_custom_call.1} parent=55 // pred_check
        %p2646 = pneg %p246
      $region58: #{tpu_custom_call.1} parent=55 // pred_check_branch
        %2648 = sbr.rel (%p2646) target = $region60
      $region59: #{tpu_custom_call.1} parent=55 // pred_region
        %s2649 = smul.u32 6, %s25
      $region60: #{tpu_custom_call.1} parent=55 // pred_fallthru
        _
    $region56: #{tpu_custom_call.1} parent=5 // pred_fallthru
      _
    %p2650 = scmp.le.s32.totalorder 2, %s15
    // Predicated region
    $region61: #{tpu_custom_call.1} parent=5 // pred_check
      %p2651 = pneg %p2650
    $region62: #{tpu_custom_call.1} parent=5 // pred_check_branch
      %2653 = sbr.rel (%p2651) target = $region64
    $region63: #{tpu_custom_call.1} parent=5 // pred_region
      %s2654 = ssub.s32 %s15, 2
      // Predicated region
      $region65: #{tpu_custom_call.1} parent=63 // pred_check
        %p2655 = pneg %p252
      $region66: #{tpu_custom_call.1} parent=63 // pred_check_branch
        %2657 = sbr.rel (%p2655) target = $region68
      $region67: #{tpu_custom_call.1} parent=63 // pred_region
        %s2658 = smul.u32 6, %s27
        %p2659 = scmp.lt.s32.totalorder %s26, 1
        %s2660 = scalar_select %p2659, %s26, 1
        %p2661 = scmp.lt.s32.totalorder %s2658, 17
        %s2662 = scalar_select %p2661, %s2658, 17
        %s2663 = smul.addr %s2660, 18
        %s2664 = sadd.s32 %s2662, %s2663
        %s2665 = smul.addr %s2664, 4
        %s2666 = scalar_lea.vmem %s9, %s2665
      $region68: #{tpu_custom_call.1} parent=63 // pred_fallthru
        _
    $region64: #{tpu_custom_call.1} parent=5 // pred_fallthru
      _
  $region6: #{tpu_custom_call.1} parent=0 // loop_footer
    %s19 = sadd.s32 1, %s15
  $region7: #{tpu_custom_call.1} parent=0 // loop_footer_branch
    %14 = sbr.rel target = $region3
  $region8: #{tpu_custom_call.1} parent=0 // loop_exit
    _

</llo_original>
